<compile_context>
chip_gen: v7x
topology: tpu7x:2x2x1
jax: 0.10.0
libtpu: 0.0.40
codegen_flags: <defaults>
</compile_context>

<pallas_src>
import numpy as np
import jax
import jax.numpy as jnp
from jax.experimental import pallas as pl
from jax.experimental.pallas import tpu as pltpu

# ---- small synthetic config (mirrors parsingNet.__init__ at reduced sizes) ----
SEQ_LEN = 2
C_IN = 4                      # backbone output channels (512 in the real model)
H_FEAT, W_FEAT = 9, 25        # hardcoded in parsingNet (input_size=(9, 25))
NUM_LAYERS = 2
HIDDEN_SIZES = [8, 8]
KERNEL_SIZES = [(3, 3), (3, 3)]
CLS_DIM = (5, 3, 2)
TOTAL_DIM = int(np.prod(CLS_DIM))
POOL_MID = 256
POOL_OUT = 8
HW = H_FEAT * W_FEAT                       # 225
FLAT_DIM = POOL_OUT * HW                   # 8 * 9 * 25 = 1800

# Channel-major, lane-padded image geometry:
#   * each image row is stored as [left-halo, 25 interior pixels, right-halo] = 27 lanes,
#   * plus a full zero halo row above and below the image,
# so the 3x3 "same" conv becomes 9 contiguous lane-shifted slices (tap (dy,dx) starts at
# dy*27 + dx) with NO wrap masks, and every gate/state tensor is lane-dense (C, 243).
ROWPAD = W_FEAT + 2                        # 27
OUT_LEN = H_FEAT * ROWPAD                  # 243 = 225 interior + 18 halo columns
QSTART = ROWPAD + 1                        # slab offset of output position o = 0
SLAB_LEN = ROWPAD * (H_FEAT + 3)           # 324 >= max tap slice end (56 + 243)
SLAB_CH = 16                               # = max(C_IN+H0, H0+H1); keeps tap blocks aligned
TAP_STARTS = tuple(dy * ROWPAD + dx for dy in range(3) for dx in range(3))

# 1 at interior output positions (o = 27*y + x with x < 25), 0 at the halo columns.
_HMASK = ((np.arange(OUT_LEN) % ROWPAD) < W_FEAT).astype(np.float32).reshape(1, OUT_LEN)


def _vmem_spec():
    # whole (small) array resident in VMEM, single-block (no grid)
    return pl.BlockSpec(memory_space=pltpu.MemorySpace.VMEM)


# ----------------------------- fully fused forward kernel -----------------------------
def fused_parsingnet_kernel(feats_ref, hmask_ref,
                            w0_ref, b0_ref, w1_ref, b1_ref,
                            wp_ref, bp_ref, wc_ref, bc_ref,
                            out_ref,
                            slab0_ref, slab1_ref):
    # Zero both padded slabs once; only the [QSTART, QSTART+OUT_LEN) window is rewritten
    # below, so the halo rows / tail stay zero for every layer / timestep.
    slab0_ref[...] = jnp.zeros(slab0_ref.shape, slab0_ref.dtype)
    slab1_ref[...] = jnp.zeros(slab1_ref.shape, slab1_ref.dtype)

    hmask = hmask_ref[...]                                   # (1, OUT_LEN) f32

    def convlstm_cell(slab_ref, w_ref, b_ref, x_bf16, h_f32, c_f32, cin, hd):
        # channel-concat([x, h_prev]) without a concatenate op: two block stores at
        # different channel rows of the shared bf16 slab (x is zero at halo columns by
        # construction, h is masked before it gets here).
        slab_ref[0:cin, QSTART:QSTART + OUT_LEN] = x_bf16
        slab_ref[cin:cin + hd, QSTART:QSTART + OUT_LEN] = h_f32.astype(jnp.bfloat16)

        # im2col: 9 lane-shifted slices stacked along sublanes -> (9*SLAB_CH, OUT_LEN),
        # then ONE deep-K bf16 MXU matmul (K = 144) with f32 accumulation.
        col = jnp.concatenate(
            [slab_ref[:, s:s + OUT_LEN] for s in TAP_STARTS], axis=0)
        acc = jnp.dot(w_ref[...], col,
                      preferred_element_type=jnp.float32) + b_ref[...]   # (4*hd, OUT_LEN)

        # LSTM gates (torch split order i, f, o, g along channels); single sigmoid over
        # the contiguous 3-gate block, all math f32 and lane-dense.
        ifo = jax.nn.sigmoid(acc[0:3 * hd, :])
        g_g = jnp.tanh(acc[3 * hd:4 * hd, :])
        c_n = ifo[hd:2 * hd, :] * c_f32 + ifo[0:hd, :] * g_g
        # mask the halo columns so the next slab store keeps the zero halo intact
        h_n = ifo[2 * hd:3 * hd, :] * jnp.tanh(c_n) * hmask
        return h_n, c_n

    hd0, hd1 = HIDDEN_SIZES
    h0 = jnp.zeros((hd0, OUT_LEN), jnp.float32)              # init_hidden
    c0 = jnp.zeros((hd0, OUT_LEN), jnp.float32)
    h1 = jnp.zeros((hd1, OUT_LEN), jnp.float32)
    c1 = jnp.zeros((hd1, OUT_LEN), jnp.float32)

    # Layers interleaved per timestep (layer-1 step t only needs layer-0 step t); only the
    # last h of the last layer is used downstream (return_all_layers=False + pool of the
    # final frame), so no per-timestep output lists are kept.
    # TODO(synk): for production seq_len, swap this static unroll for lax.fori_loop with
    # h/c carried in VMEM scratch to bound compile size.
    for t in range(SEQ_LEN):
        h0, c0 = convlstm_cell(slab0_ref, w0_ref, b0_ref,
                               feats_ref[t], h0, c0, C_IN, hd0)
        h1, c1 = convlstm_cell(slab1_ref, w1_ref, b1_ref,
                               h0.astype(jnp.bfloat16), h1, c1, hd0, hd1)

    # ---- pool head: the two activation-free 1x1 convs pre-folded to one (8, hd) matmul ----
    pooled = jnp.dot(wp_ref[...], h1,
                     preferred_element_type=jnp.float32) + bp_ref[...]    # (8, OUT_LEN)

    # ---- classifier: channel-major flatten (torch's NCHW .view) via a lane concat, then
    # one deep-K matmul against the halo-padded Linear weight (zero rows at halo columns).
    flat = jnp.concatenate([pooled[c:c + 1, :] for c in range(POOL_OUT)], axis=1)
    out_ref[...] = jnp.dot(flat, wc_ref[...],
                           preferred_element_type=jnp.float32) + bc_ref[...]


# --------------------------------- parsingNet forward ---------------------------------
@jax.jit
def parsing_net_forward(x, params):
    # x: (1, T, C_IN, H, W) -- PyTorch NCHW-style clip, batch of 1.
    feats = jnp.squeeze(x, axis=0)                           # torch.squeeze(x)
    # TODO(synk): resnet backbone (self.model) not in the provided source; identity features.
    feats = jnp.pad(feats, ((0, 0), (0, 0), (0, 0), (0, ROWPAD - W_FEAT)))
    feats = feats.reshape(SEQ_LEN, C_IN, OUT_LEN).astype(jnp.bfloat16)
    hmask = jnp.asarray(_HMASK)

    (w0, b0), (w1, b1) = params["lstm_kernel"]
    wp, bp = params["pool_kernel"]
    wc, bc = params["cls_kernel"]

    logits = pl.pallas_call(
        fused_parsingnet_kernel,
        out_shape=jax.ShapeDtypeStruct((1, TOTAL_DIM), jnp.float32),
        in_specs=[_vmem_spec()] * 10,
        out_specs=_vmem_spec(),
        scratch_shapes=[
            pltpu.VMEM((SLAB_CH, SLAB_LEN), jnp.bfloat16),
            pltpu.VMEM((SLAB_CH, SLAB_LEN), jnp.bfloat16),
        ],
        # Single-TensorCore, everything-resident kernel (batch == 1).
        # TODO(synk): add a "parallel" batch grid axis to use v7x's 2nd TC once batch > 1.
    )(feats, hmask, w0, b0, w1, b1, wp, bp, wc, bc)
    return logits.reshape(1, *CLS_DIM)


# --------------------------------- deterministic params ---------------------------------
def init_params(key):
    keys = jax.random.split(key, 10)
    params = {"lstm_kernel": [], "lstm_ref": []}
    cin = C_IN
    for layer in range(NUM_LAYERS):
        hd = HIDDEN_SIZES[layer]
        # torch Conv2d weight (4*hd, cin+hd, 3, 3), gate order i,f,o,g; stored bf16 so the
        # kernel and the reference consume bit-identical MXU operands.
        w_t = (0.1 * jax.random.normal(keys[2 * layer], (4 * hd, cin + hd, 3, 3),
                                       jnp.float32)).astype(jnp.bfloat16)
        b = 0.1 * jax.random.normal(keys[2 * layer + 1], (4 * hd,), jnp.float32)
        # kernel (im2col) layout: (4*hd, 9*SLAB_CH), column = (dy*3+dx)*SLAB_CH + channel
        w_perm = jnp.transpose(w_t, (0, 2, 3, 1))                           # (4hd, 3, 3, C)
        w_perm = jnp.pad(w_perm, ((0, 0), (0, 0), (0, 0), (0, SLAB_CH - (cin + hd))))
        w_cm = w_perm.reshape(4 * hd, 9 * SLAB_CH)
        params["lstm_kernel"].append((w_cm, b.reshape(4 * hd, 1)))
        params["lstm_ref"].append((w_t, b))
        cin = hd

    # pool: Conv2d(hd, 256, 1) -> Conv2d(256, 8, 1); no nonlinearity between them in the
    # PyTorch module, so the pair folds exactly (done in f32/HIGHEST) to one (8, hd) matrix.
    w1 = 0.1 * jax.random.normal(keys[4], (POOL_MID, HIDDEN_SIZES[-1]), jnp.float32)
    b1 = 0.1 * jax.random.normal(keys[5], (POOL_MID,), jnp.float32)
    w2 = 0.1 * jax.random.normal(keys[6], (POOL_OUT, POOL_MID), jnp.float32)
    b2 = 0.1 * jax.random.normal(keys[7], (POOL_OUT,), jnp.float32)
    w_pool = jnp.dot(w2, w1, precision=jax.lax.Precision.HIGHEST)          # (8, hd)
    b_pool = jnp.dot(w2, b1, precision=jax.lax.Precision.HIGHEST) + b2     # (8,)
    params["pool_kernel"] = (w_pool, b_pool.reshape(POOL_OUT, 1))
    params["pool_ref"] = (w1, b1, w2, b2)

    # classifier: torch Linear(1800, total_dim).  The kernel sees the pooled map in the
    # channel-major lane-padded (8, 243) layout, so fold torch's NCHW flatten AND the
    # 2-column halo padding into the weight once at init (zero rows at halo columns).
    wc_t = 0.01 * jax.random.normal(keys[8], (TOTAL_DIM, FLAT_DIM), jnp.float32)
    bc = 0.01 * jax.random.normal(keys[9], (1, TOTAL_DIM), jnp.float32)
    wc4 = wc_t.reshape(TOTAL_DIM, POOL_OUT, H_FEAT, W_FEAT)
    wc_pad = jnp.pad(wc4, ((0, 0), (0, 0), (0, 0), (0, ROWPAD - W_FEAT)))
    wc_pad = jnp.transpose(wc_pad, (1, 2, 3, 0)).reshape(POOL_OUT * OUT_LEN, TOTAL_DIM)
    params["cls_kernel"] = (wc_pad, bc)
    params["cls_ref"] = (wc_t, bc)
    return params


# --------------------- pure-JAX reference (mirrors the PyTorch graph) ---------------------
def reference_forward(x, params):
    feats = jnp.transpose(jnp.squeeze(x, axis=0), (0, 2, 3, 1)).astype(jnp.float32)
    cur = feats                                                   # (T, H, W, C)
    for layer in range(NUM_LAYERS):
        w_t, b = params["lstm_ref"][layer]                        # OIHW bf16, (4hd,) f32
        hd = HIDDEN_SIZES[layer]
        w_hwio = jnp.transpose(w_t, (2, 3, 1, 0))
        h = jnp.zeros((H_FEAT, W_FEAT, hd), jnp.float32)
        c = jnp.zeros((H_FEAT, W_FEAT, hd), jnp.float32)
        outs = []
        for t in range(SEQ_LEN):
            comb = jnp.concatenate([cur[t], h], axis=-1)[None].astype(jnp.bfloat16)
            conv = jax.lax.conv_general_dilated(
                comb, w_hwio, (1, 1), "SAME",
                dimension_numbers=("NHWC", "HWIO", "NHWC"),
                preferred_element_type=jnp.float32)[0] + b.reshape(1, 1, -1)
            i_g = jax.nn.sigmoid(conv[..., 0 * hd:1 * hd])
            f_g = jax.nn.sigmoid(conv[..., 1 * hd:2 * hd])
            o_g = jax.nn.sigmoid(conv[..., 2 * hd:3 * hd])
            g_g = jnp.tanh(conv[..., 3 * hd:4 * hd])
            c = f_g * c + i_g * g_g
            h = o_g * jnp.tanh(c)
            outs.append(h)
        cur = jnp.stack(outs, axis=0)
    h_last = cur[-1].reshape(HW, HIDDEN_SIZES[-1])                # (225, hd) pixel-major
    w1, b1, w2, b2 = params["pool_ref"]
    t1 = jnp.dot(h_last, w1.T, precision=jax.lax.Precision.HIGHEST) + b1   # (225, 256)
    t2 = jnp.dot(t1, w2.T, precision=jax.lax.Precision.HIGHEST) + b2       # (225, 8)
    flat = jnp.transpose(t2.reshape(H_FEAT, W_FEAT, POOL_OUT),
                         (2, 0, 1)).reshape(1, FLAT_DIM)          # torch NCHW flatten
    wc_t, bc = params["cls_ref"]
    logits = jnp.dot(flat, wc_t.T, precision=jax.lax.Precision.HIGHEST) + bc
    return logits.reshape(1, *CLS_DIM)


if __name__ == "__main__":
    key = jax.random.PRNGKey(0)
    key, kx, kp = jax.random.split(key, 3)
    params = init_params(kp)
    x = jax.random.normal(kx, (1, SEQ_LEN, C_IN, H_FEAT, W_FEAT), jnp.float32)

    out = parsing_net_forward(x, params)
    jax.block_until_ready(out)
    assert out.shape == (1,) + CLS_DIM, out.shape

    ref = reference_forward(x, params)
    np.testing.assert_allclose(np.asarray(out), np.asarray(ref), atol=5e-3, rtol=5e-3)

    print("KERNEL_OK")
</pallas_src>

<mosaic_0001>
module attributes {stable_mosaic.version = 11 : i64} {
  func.func @fused_parsingnet_kernel(%arg0: memref<2x4x243xbf16, #tpu.memory_space<vmem>>, %arg1: memref<1x243xf32, #tpu.memory_space<vmem>>, %arg2: memref<32x144xbf16, #tpu.memory_space<vmem>>, %arg3: memref<32x1xf32, #tpu.memory_space<vmem>>, %arg4: memref<32x144xbf16, #tpu.memory_space<vmem>>, %arg5: memref<32x1xf32, #tpu.memory_space<vmem>>, %arg6: memref<8x8xf32, #tpu.memory_space<vmem>>, %arg7: memref<8x1xf32, #tpu.memory_space<vmem>>, %arg8: memref<1944x30xf32, #tpu.memory_space<vmem>>, %arg9: memref<1x30xf32, #tpu.memory_space<vmem>>, %arg10: memref<1x30xf32, #tpu.memory_space<vmem>>, %arg11: memref<16x324xbf16, #tpu.memory_space<vmem>>, %arg12: memref<16x324xbf16, #tpu.memory_space<vmem>>) attributes {dimension_semantics = [], scalar_prefetch = 0 : i64, scratch_operands = 2 : i64, tpu.core_type = #tpu.core_type<tc>} {
    %cst = arith.constant 0.000000e+00 : bf16
    %0 = vector.broadcast %cst : bf16 to vector<16x324xbf16>
    %c0 = arith.constant 0 : index
    %c0_0 = arith.constant 0 : index
    %1 = vector.load %arg11[%c0, %c0_0] : memref<16x324xbf16, #tpu.memory_space<vmem>>, vector<16x324xbf16>
    tpu.vector_store %arg11[%c0, %c0_0], %0 {strides = array<i32>} : memref<16x324xbf16, #tpu.memory_space<vmem>>, vector<16x324xbf16>,
    %cst_1 = arith.constant 0.000000e+00 : bf16
    %2 = vector.broadcast %cst_1 : bf16 to vector<16x324xbf16>
    %c0_2 = arith.constant 0 : index
    %c0_3 = arith.constant 0 : index
    %3 = vector.load %arg12[%c0_2, %c0_3] : memref<16x324xbf16, #tpu.memory_space<vmem>>, vector<16x324xbf16>
    tpu.vector_store %arg12[%c0_2, %c0_3], %2 {strides = array<i32>} : memref<16x324xbf16, #tpu.memory_space<vmem>>, vector<16x324xbf16>,
    %c0_4 = arith.constant 0 : index
    %c0_5 = arith.constant 0 : index
    %4 = vector.load %arg1[%c0_4, %c0_5] : memref<1x243xf32, #tpu.memory_space<vmem>>, vector<1x243xf32>
    %cst_6 = arith.constant 0.000000e+00 : f32
    %5 = vector.broadcast %cst_6 : f32 to vector<8x243xf32>
    %cst_7 = arith.constant 0.000000e+00 : f32
    %6 = vector.broadcast %cst_7 : f32 to vector<8x243xf32>
    %cst_8 = arith.constant 0.000000e+00 : f32
    %7 = vector.broadcast %cst_8 : f32 to vector<8x243xf32>
    %cst_9 = arith.constant 0.000000e+00 : f32
    %8 = vector.broadcast %cst_9 : f32 to vector<8x243xf32>
    %c0_10 = arith.constant 0 : index
    %c0_11 = arith.constant 0 : index
    %c0_12 = arith.constant 0 : index
    %9 = vector.load %arg0[%c0_10, %c0_11, %c0_12] : memref<2x4x243xbf16, #tpu.memory_space<vmem>>, vector<1x4x243xbf16>
    %10 = vector.shape_cast %9 : vector<1x4x243xbf16> to vector<4x243xbf16>
    %c0_13 = arith.constant 0 : index
    %c28 = arith.constant 28 : index
    %11 = vector.load %arg11[%c0_13, %c28] : memref<16x324xbf16, #tpu.memory_space<vmem>>, vector<4x243xbf16>
    tpu.vector_store %arg11[%c0_13, %c28], %10 {strides = array<i32>} : memref<16x324xbf16, #tpu.memory_space<vmem>>, vector<4x243xbf16>,
    %12 = arith.truncf %5 : vector<8x243xf32> to vector<8x243xbf16>
    %c4 = arith.constant 4 : index
    %c28_14 = arith.constant 28 : index
    %13 = vector.load %arg11[%c4, %c28_14] : memref<16x324xbf16, #tpu.memory_space<vmem>>, vector<8x243xbf16>
    tpu.vector_store %arg11[%c4, %c28_14], %12 {strides = array<i32>} : memref<16x324xbf16, #tpu.memory_space<vmem>>, vector<8x243xbf16>,
    %c0_15 = arith.constant 0 : index
    %c0_16 = arith.constant 0 : index
    %14 = vector.load %arg11[%c0_15, %c0_16] : memref<16x324xbf16, #tpu.memory_space<vmem>>, vector<16x243xbf16>
    %c0_17 = arith.constant 0 : index
    %c1 = arith.constant 1 : index
    %15 = vector.load %arg11[%c0_17, %c1] : memref<16x324xbf16, #tpu.memory_space<vmem>>, vector<16x243xbf16>
    %c0_18 = arith.constant 0 : index
    %c2 = arith.constant 2 : index
    %16 = vector.load %arg11[%c0_18, %c2] : memref<16x324xbf16, #tpu.memory_space<vmem>>, vector<16x243xbf16>
    %c0_19 = arith.constant 0 : index
    %c27 = arith.constant 27 : index
    %17 = vector.load %arg11[%c0_19, %c27] : memref<16x324xbf16, #tpu.memory_space<vmem>>, vector<16x243xbf16>
    %c0_20 = arith.constant 0 : index
    %c28_21 = arith.constant 28 : index
    %18 = vector.load %arg11[%c0_20, %c28_21] : memref<16x324xbf16, #tpu.memory_space<vmem>>, vector<16x243xbf16>
    %c0_22 = arith.constant 0 : index
    %c29 = arith.constant 29 : index
    %19 = vector.load %arg11[%c0_22, %c29] : memref<16x324xbf16, #tpu.memory_space<vmem>>, vector<16x243xbf16>
    %c0_23 = arith.constant 0 : index
    %c54 = arith.constant 54 : index
    %20 = vector.load %arg11[%c0_23, %c54] : memref<16x324xbf16, #tpu.memory_space<vmem>>, vector<16x243xbf16>
    %c0_24 = arith.constant 0 : index
    %c55 = arith.constant 55 : index
    %21 = vector.load %arg11[%c0_24, %c55] : memref<16x324xbf16, #tpu.memory_space<vmem>>, vector<16x243xbf16>
    %c0_25 = arith.constant 0 : index
    %c56 = arith.constant 56 : index
    %22 = vector.load %arg11[%c0_25, %c56] : memref<16x324xbf16, #tpu.memory_space<vmem>>, vector<16x243xbf16>
    %23 = tpu.concatenate %14, %15, %16, %17, %18, %19, %20, %21, %22 in 0 : vector<16x243xbf16>, vector<16x243xbf16>, vector<16x243xbf16>, vector<16x243xbf16>, vector<16x243xbf16>, vector<16x243xbf16>, vector<16x243xbf16>, vector<16x243xbf16>, vector<16x243xbf16> -> vector<144x243xbf16>
    %c0_26 = arith.constant 0 : index
    %c0_27 = arith.constant 0 : index
    %24 = vector.load %arg2[%c0_26, %c0_27] : memref<32x144xbf16, #tpu.memory_space<vmem>>, vector<32x144xbf16>
    %cst_28 = arith.constant dense<0.000000e+00> : vector<32x243xf32>
    %25 = tpu.matmul %24, %23, %cst_28 {dimension_numbers = #tpu.dot_dimension_numbers<[1], [0], [0], [1], [0, 0, 1, 1], [], []>} : vector<32x144xbf16>, vector<144x243xbf16>, vector<32x243xf32> -> vector<32x243xf32>
    %c0_29 = arith.constant 0 : index
    %c0_30 = arith.constant 0 : index
    %26 = vector.load %arg3[%c0_29, %c0_30] : memref<32x1xf32, #tpu.memory_space<vmem>>, vector<32x1xf32>
    %27 = vector.broadcast %26 : vector<32x1xf32> to vector<32x243xf32>
    %28 = arith.addf %25, %27 : vector<32x243xf32>
    %29 = vector.extract_strided_slice %28 {offsets = [0, 0], sizes = [24, 243], strides = [1, 1]} : vector<32x243xf32> to vector<24x243xf32>
    %30 = arith.negf %29 : vector<24x243xf32>
    %31 = math.exp %30 : vector<24x243xf32>
    %cst_31 = arith.constant 1.000000e+00 : f32
    %32 = vector.broadcast %cst_31 : f32 to vector<24x243xf32>
    %33 = arith.addf %32, %31 : vector<24x243xf32>
    %34 = arith.divf %32, %33 : vector<24x243xf32>
    %35 = vector.extract_strided_slice %28 {offsets = [24, 0], sizes = [8, 243], strides = [1, 1]} : vector<32x243xf32> to vector<8x243xf32>
    %36 = math.tanh %35 : vector<8x243xf32>
    %37 = vector.extract_strided_slice %34 {offsets = [8, 0], sizes = [8, 243], strides = [1, 1]} : vector<24x243xf32> to vector<8x243xf32>
    %38 = arith.mulf %37, %6 : vector<8x243xf32>
    %39 = vector.extract_strided_slice %34 {offsets = [0, 0], sizes = [8, 243], strides = [1, 1]} : vector<24x243xf32> to vector<8x243xf32>
    %40 = arith.mulf %39, %36 : vector<8x243xf32>
    %41 = arith.addf %38, %40 : vector<8x243xf32>
    %42 = vector.extract_strided_slice %34 {offsets = [16, 0], sizes = [8, 243], strides = [1, 1]} : vector<24x243xf32> to vector<8x243xf32>
    %43 = math.tanh %41 : vector<8x243xf32>
    %44 = arith.mulf %42, %43 : vector<8x243xf32>
    %45 = vector.broadcast %4 : vector<1x243xf32> to vector<8x243xf32>
    %46 = arith.mulf %44, %45 : vector<8x243xf32>
    %47 = arith.truncf %46 : vector<8x243xf32> to vector<8x243xbf16>
    %c0_32 = arith.constant 0 : index
    %c28_33 = arith.constant 28 : index
    %48 = vector.load %arg12[%c0_32, %c28_33] : memref<16x324xbf16, #tpu.memory_space<vmem>>, vector<8x243xbf16>
    tpu.vector_store %arg12[%c0_32, %c28_33], %47 {strides = array<i32>} : memref<16x324xbf16, #tpu.memory_space<vmem>>, vector<8x243xbf16>,
    %49 = arith.truncf %7 : vector<8x243xf32> to vector<8x243xbf16>
    %c8 = arith.constant 8 : index
    %c28_34 = arith.constant 28 : index
    %50 = vector.load %arg12[%c8, %c28_34] : memref<16x324xbf16, #tpu.memory_space<vmem>>, vector<8x243xbf16>
    tpu.vector_store %arg12[%c8, %c28_34], %49 {strides = array<i32>} : memref<16x324xbf16, #tpu.memory_space<vmem>>, vector<8x243xbf16>,
    %c0_35 = arith.constant 0 : index
    %c0_36 = arith.constant 0 : index
    %51 = vector.load %arg12[%c0_35, %c0_36] : memref<16x324xbf16, #tpu.memory_space<vmem>>, vector<16x243xbf16>
    %c0_37 = arith.constant 0 : index
    %c1_38 = arith.constant 1 : index
    %52 = vector.load %arg12[%c0_37, %c1_38] : memref<16x324xbf16, #tpu.memory_space<vmem>>, vector<16x243xbf16>
    %c0_39 = arith.constant 0 : index
    %c2_40 = arith.constant 2 : index
    %53 = vector.load %arg12[%c0_39, %c2_40] : memref<16x324xbf16, #tpu.memory_space<vmem>>, vector<16x243xbf16>
    %c0_41 = arith.constant 0 : index
    %c27_42 = arith.constant 27 : index
    %54 = vector.load %arg12[%c0_41, %c27_42] : memref<16x324xbf16, #tpu.memory_space<vmem>>, vector<16x243xbf16>
    %c0_43 = arith.constant 0 : index
    %c28_44 = arith.constant 28 : index
    %55 = vector.load %arg12[%c0_43, %c28_44] : memref<16x324xbf16, #tpu.memory_space<vmem>>, vector<16x243xbf16>
    %c0_45 = arith.constant 0 : index
    %c29_46 = arith.constant 29 : index
    %56 = vector.load %arg12[%c0_45, %c29_46] : memref<16x324xbf16, #tpu.memory_space<vmem>>, vector<16x243xbf16>
    %c0_47 = arith.constant 0 : index
    %c54_48 = arith.constant 54 : index
    %57 = vector.load %arg12[%c0_47, %c54_48] : memref<16x324xbf16, #tpu.memory_space<vmem>>, vector<16x243xbf16>
    %c0_49 = arith.constant 0 : index
    %c55_50 = arith.constant 55 : index
    %58 = vector.load %arg12[%c0_49, %c55_50] : memref<16x324xbf16, #tpu.memory_space<vmem>>, vector<16x243xbf16>
    %c0_51 = arith.constant 0 : index
    %c56_52 = arith.constant 56 : index
    %59 = vector.load %arg12[%c0_51, %c56_52] : memref<16x324xbf16, #tpu.memory_space<vmem>>, vector<16x243xbf16>
    %60 = tpu.concatenate %51, %52, %53, %54, %55, %56, %57, %58, %59 in 0 : vector<16x243xbf16>, vector<16x243xbf16>, vector<16x243xbf16>, vector<16x243xbf16>, vector<16x243xbf16>, vector<16x243xbf16>, vector<16x243xbf16>, vector<16x243xbf16>, vector<16x243xbf16> -> vector<144x243xbf16>
    %c0_53 = arith.constant 0 : index
    %c0_54 = arith.constant 0 : index
    %61 = vector.load %arg4[%c0_53, %c0_54] : memref<32x144xbf16, #tpu.memory_space<vmem>>, vector<32x144xbf16>
    %cst_55 = arith.constant dense<0.000000e+00> : vector<32x243xf32>
    %62 = tpu.matmul %61, %60, %cst_55 {dimension_numbers = #tpu.dot_dimension_numbers<[1], [0], [0], [1], [0, 0, 1, 1], [], []>} : vector<32x144xbf16>, vector<144x243xbf16>, vector<32x243xf32> -> vector<32x243xf32>
    %c0_56 = arith.constant 0 : index
    %c0_57 = arith.constant 0 : index
    %63 = vector.load %arg5[%c0_56, %c0_57] : memref<32x1xf32, #tpu.memory_space<vmem>>, vector<32x1xf32>
    %64 = vector.broadcast %63 : vector<32x1xf32> to vector<32x243xf32>
    %65 = arith.addf %62, %64 : vector<32x243xf32>
    %66 = vector.extract_strided_slice %65 {offsets = [0, 0], sizes = [24, 243], strides = [1, 1]} : vector<32x243xf32> to vector<24x243xf32>
    %67 = arith.negf %66 : vector<24x243xf32>
    %68 = math.exp %67 : vector<24x243xf32>
    %cst_58 = arith.constant 1.000000e+00 : f32
    %69 = vector.broadcast %cst_58 : f32 to vector<24x243xf32>
    %70 = arith.addf %69, %68 : vector<24x243xf32>
    %71 = arith.divf %69, %70 : vector<24x243xf32>
    %72 = vector.extract_strided_slice %65 {offsets = [24, 0], sizes = [8, 243], strides = [1, 1]} : vector<32x243xf32> to vector<8x243xf32>
    %73 = math.tanh %72 : vector<8x243xf32>
    %74 = vector.extract_strided_slice %71 {offsets = [8, 0], sizes = [8, 243], strides = [1, 1]} : vector<24x243xf32> to vector<8x243xf32>
    %75 = arith.mulf %74, %8 : vector<8x243xf32>
    %76 = vector.extract_strided_slice %71 {offsets = [0, 0], sizes = [8, 243], strides = [1, 1]} : vector<24x243xf32> to vector<8x243xf32>
    %77 = arith.mulf %76, %73 : vector<8x243xf32>
    %78 = arith.addf %75, %77 : vector<8x243xf32>
    %79 = vector.extract_strided_slice %71 {offsets = [16, 0], sizes = [8, 243], strides = [1, 1]} : vector<24x243xf32> to vector<8x243xf32>
    %80 = math.tanh %78 : vector<8x243xf32>
    %81 = arith.mulf %79, %80 : vector<8x243xf32>
    %82 = vector.broadcast %4 : vector<1x243xf32> to vector<8x243xf32>
    %83 = arith.mulf %81, %82 : vector<8x243xf32>
    %c1_59 = arith.constant 1 : index
    %c0_60 = arith.constant 0 : index
    %c0_61 = arith.constant 0 : index
    %84 = vector.load %arg0[%c1_59, %c0_60, %c0_61] : memref<2x4x243xbf16, #tpu.memory_space<vmem>>, vector<1x4x243xbf16>
    %85 = vector.shape_cast %84 : vector<1x4x243xbf16> to vector<4x243xbf16>
    %c0_62 = arith.constant 0 : index
    %c28_63 = arith.constant 28 : index
    %86 = vector.load %arg11[%c0_62, %c28_63] : memref<16x324xbf16, #tpu.memory_space<vmem>>, vector<4x243xbf16>
    tpu.vector_store %arg11[%c0_62, %c28_63], %85 {strides = array<i32>} : memref<16x324xbf16, #tpu.memory_space<vmem>>, vector<4x243xbf16>,
    %87 = arith.truncf %46 : vector<8x243xf32> to vector<8x243xbf16>
    %c4_64 = arith.constant 4 : index
    %c28_65 = arith.constant 28 : index
    %88 = vector.load %arg11[%c4_64, %c28_65] : memref<16x324xbf16, #tpu.memory_space<vmem>>, vector<8x243xbf16>
    tpu.vector_store %arg11[%c4_64, %c28_65], %87 {strides = array<i32>} : memref<16x324xbf16, #tpu.memory_space<vmem>>, vector<8x243xbf16>,
    %c0_66 = arith.constant 0 : index
    %c0_67 = arith.constant 0 : index
    %89 = vector.load %arg11[%c0_66, %c0_67] : memref<16x324xbf16, #tpu.memory_space<vmem>>, vector<16x243xbf16>
    %c0_68 = arith.constant 0 : index
    %c1_69 = arith.constant 1 : index
    %90 = vector.load %arg11[%c0_68, %c1_69] : memref<16x324xbf16, #tpu.memory_space<vmem>>, vector<16x243xbf16>
    %c0_70 = arith.constant 0 : index
    %c2_71 = arith.constant 2 : index
    %91 = vector.load %arg11[%c0_70, %c2_71] : memref<16x324xbf16, #tpu.memory_space<vmem>>, vector<16x243xbf16>
    %c0_72 = arith.constant 0 : index
    %c27_73 = arith.constant 27 : index
    %92 = vector.load %arg11[%c0_72, %c27_73] : memref<16x324xbf16, #tpu.memory_space<vmem>>, vector<16x243xbf16>
    %c0_74 = arith.constant 0 : index
    %c28_75 = arith.constant 28 : index
    %93 = vector.load %arg11[%c0_74, %c28_75] : memref<16x324xbf16, #tpu.memory_space<vmem>>, vector<16x243xbf16>
    %c0_76 = arith.constant 0 : index
    %c29_77 = arith.constant 29 : index
    %94 = vector.load %arg11[%c0_76, %c29_77] : memref<16x324xbf16, #tpu.memory_space<vmem>>, vector<16x243xbf16>
    %c0_78 = arith.constant 0 : index
    %c54_79 = arith.constant 54 : index
    %95 = vector.load %arg11[%c0_78, %c54_79] : memref<16x324xbf16, #tpu.memory_space<vmem>>, vector<16x243xbf16>
    %c0_80 = arith.constant 0 : index
    %c55_81 = arith.constant 55 : index
    %96 = vector.load %arg11[%c0_80, %c55_81] : memref<16x324xbf16, #tpu.memory_space<vmem>>, vector<16x243xbf16>
    %c0_82 = arith.constant 0 : index
    %c56_83 = arith.constant 56 : index
    %97 = vector.load %arg11[%c0_82, %c56_83] : memref<16x324xbf16, #tpu.memory_space<vmem>>, vector<16x243xbf16>
    %98 = tpu.concatenate %89, %90, %91, %92, %93, %94, %95, %96, %97 in 0 : vector<16x243xbf16>, vector<16x243xbf16>, vector<16x243xbf16>, vector<16x243xbf16>, vector<16x243xbf16>, vector<16x243xbf16>, vector<16x243xbf16>, vector<16x243xbf16>, vector<16x243xbf16> -> vector<144x243xbf16>
    %c0_84 = arith.constant 0 : index
    %c0_85 = arith.constant 0 : index
    %99 = vector.load %arg2[%c0_84, %c0_85] : memref<32x144xbf16, #tpu.memory_space<vmem>>, vector<32x144xbf16>
    %cst_86 = arith.constant dense<0.000000e+00> : vector<32x243xf32>
    %100 = tpu.matmul %99, %98, %cst_86 {dimension_numbers = #tpu.dot_dimension_numbers<[1], [0], [0], [1], [0, 0, 1, 1], [], []>} : vector<32x144xbf16>, vector<144x243xbf16>, vector<32x243xf32> -> vector<32x243xf32>
    %c0_87 = arith.constant 0 : index
    %c0_88 = arith.constant 0 : index
    %101 = vector.load %arg3[%c0_87, %c0_88] : memref<32x1xf32, #tpu.memory_space<vmem>>, vector<32x1xf32>
    %102 = vector.broadcast %101 : vector<32x1xf32> to vector<32x243xf32>
    %103 = arith.addf %100, %102 : vector<32x243xf32>
    %104 = vector.extract_strided_slice %103 {offsets = [0, 0], sizes = [24, 243], strides = [1, 1]} : vector<32x243xf32> to vector<24x243xf32>
    %105 = arith.negf %104 : vector<24x243xf32>
    %106 = math.exp %105 : vector<24x243xf32>
    %cst_89 = arith.constant 1.000000e+00 : f32
    %107 = vector.broadcast %cst_89 : f32 to vector<24x243xf32>
    %108 = arith.addf %107, %106 : vector<24x243xf32>
    %109 = arith.divf %107, %108 : vector<24x243xf32>
    %110 = vector.extract_strided_slice %103 {offsets = [24, 0], sizes = [8, 243], strides = [1, 1]} : vector<32x243xf32> to vector<8x243xf32>
    %111 = math.tanh %110 : vector<8x243xf32>
    %112 = vector.extract_strided_slice %109 {offsets = [8, 0], sizes = [8, 243], strides = [1, 1]} : vector<24x243xf32> to vector<8x243xf32>
    %113 = arith.mulf %112, %41 : vector<8x243xf32>
    %114 = vector.extract_strided_slice %109 {offsets = [0, 0], sizes = [8, 243], strides = [1, 1]} : vector<24x243xf32> to vector<8x243xf32>
    %115 = arith.mulf %114, %111 : vector<8x243xf32>
    %116 = arith.addf %113, %115 : vector<8x243xf32>
    %117 = vector.extract_strided_slice %109 {offsets = [16, 0], sizes = [8, 243], strides = [1, 1]} : vector<24x243xf32> to vector<8x243xf32>
    %118 = math.tanh %116 : vector<8x243xf32>
    %119 = arith.mulf %117, %118 : vector<8x243xf32>
    %120 = vector.broadcast %4 : vector<1x243xf32> to vector<8x243xf32>
    %121 = arith.mulf %119, %120 : vector<8x243xf32>
    %122 = arith.truncf %121 : vector<8x243xf32> to vector<8x243xbf16>
    %c0_90 = arith.constant 0 : index
    %c28_91 = arith.constant 28 : index
    %123 = vector.load %arg12[%c0_90, %c28_91] : memref<16x324xbf16, #tpu.memory_space<vmem>>, vector<8x243xbf16>
    tpu.vector_store %arg12[%c0_90, %c28_91], %122 {strides = array<i32>} : memref<16x324xbf16, #tpu.memory_space<vmem>>, vector<8x243xbf16>,
    %124 = arith.truncf %83 : vector<8x243xf32> to vector<8x243xbf16>
    %c8_92 = arith.constant 8 : index
    %c28_93 = arith.constant 28 : index
    %125 = vector.load %arg12[%c8_92, %c28_93] : memref<16x324xbf16, #tpu.memory_space<vmem>>, vector<8x243xbf16>
    tpu.vector_store %arg12[%c8_92, %c28_93], %124 {strides = array<i32>} : memref<16x324xbf16, #tpu.memory_space<vmem>>, vector<8x243xbf16>,
    %c0_94 = arith.constant 0 : index
    %c0_95 = arith.constant 0 : index
    %126 = vector.load %arg12[%c0_94, %c0_95] : memref<16x324xbf16, #tpu.memory_space<vmem>>, vector<16x243xbf16>
    %c0_96 = arith.constant 0 : index
    %c1_97 = arith.constant 1 : index
    %127 = vector.load %arg12[%c0_96, %c1_97] : memref<16x324xbf16, #tpu.memory_space<vmem>>, vector<16x243xbf16>
    %c0_98 = arith.constant 0 : index
    %c2_99 = arith.constant 2 : index
    %128 = vector.load %arg12[%c0_98, %c2_99] : memref<16x324xbf16, #tpu.memory_space<vmem>>, vector<16x243xbf16>
    %c0_100 = arith.constant 0 : index
    %c27_101 = arith.constant 27 : index
    %129 = vector.load %arg12[%c0_100, %c27_101] : memref<16x324xbf16, #tpu.memory_space<vmem>>, vector<16x243xbf16>
    %c0_102 = arith.constant 0 : index
    %c28_103 = arith.constant 28 : index
    %130 = vector.load %arg12[%c0_102, %c28_103] : memref<16x324xbf16, #tpu.memory_space<vmem>>, vector<16x243xbf16>
    %c0_104 = arith.constant 0 : index
    %c29_105 = arith.constant 29 : index
    %131 = vector.load %arg12[%c0_104, %c29_105] : memref<16x324xbf16, #tpu.memory_space<vmem>>, vector<16x243xbf16>
    %c0_106 = arith.constant 0 : index
    %c54_107 = arith.constant 54 : index
    %132 = vector.load %arg12[%c0_106, %c54_107] : memref<16x324xbf16, #tpu.memory_space<vmem>>, vector<16x243xbf16>
    %c0_108 = arith.constant 0 : index
    %c55_109 = arith.constant 55 : index
    %133 = vector.load %arg12[%c0_108, %c55_109] : memref<16x324xbf16, #tpu.memory_space<vmem>>, vector<16x243xbf16>
    %c0_110 = arith.constant 0 : index
    %c56_111 = arith.constant 56 : index
    %134 = vector.load %arg12[%c0_110, %c56_111] : memref<16x324xbf16, #tpu.memory_space<vmem>>, vector<16x243xbf16>
    %135 = tpu.concatenate %126, %127, %128, %129, %130, %131, %132, %133, %134 in 0 : vector<16x243xbf16>, vector<16x243xbf16>, vector<16x243xbf16>, vector<16x243xbf16>, vector<16x243xbf16>, vector<16x243xbf16>, vector<16x243xbf16>, vector<16x243xbf16>, vector<16x243xbf16> -> vector<144x243xbf16>
    %c0_112 = arith.constant 0 : index
    %c0_113 = arith.constant 0 : index
    %136 = vector.load %arg4[%c0_112, %c0_113] : memref<32x144xbf16, #tpu.memory_space<vmem>>, vector<32x144xbf16>
    %cst_114 = arith.constant dense<0.000000e+00> : vector<32x243xf32>
    %137 = tpu.matmul %136, %135, %cst_114 {dimension_numbers = #tpu.dot_dimension_numbers<[1], [0], [0], [1], [0, 0, 1, 1], [], []>} : vector<32x144xbf16>, vector<144x243xbf16>, vector<32x243xf32> -> vector<32x243xf32>
    %c0_115 = arith.constant 0 : index
    %c0_116 = arith.constant 0 : index
    %138 = vector.load %arg5[%c0_115, %c0_116] : memref<32x1xf32, #tpu.memory_space<vmem>>, vector<32x1xf32>
    %139 = vector.broadcast %138 : vector<32x1xf32> to vector<32x243xf32>
    %140 = arith.addf %137, %139 : vector<32x243xf32>
    %141 = vector.extract_strided_slice %140 {offsets = [0, 0], sizes = [24, 243], strides = [1, 1]} : vector<32x243xf32> to vector<24x243xf32>
    %142 = arith.negf %141 : vector<24x243xf32>
    %143 = math.exp %142 : vector<24x243xf32>
    %cst_117 = arith.constant 1.000000e+00 : f32
    %144 = vector.broadcast %cst_117 : f32 to vector<24x243xf32>
    %145 = arith.addf %144, %143 : vector<24x243xf32>
    %146 = arith.divf %144, %145 : vector<24x243xf32>
    %147 = vector.extract_strided_slice %140 {offsets = [24, 0], sizes = [8, 243], strides = [1, 1]} : vector<32x243xf32> to vector<8x243xf32>
    %148 = math.tanh %147 : vector<8x243xf32>
    %149 = vector.extract_strided_slice %146 {offsets = [8, 0], sizes = [8, 243], strides = [1, 1]} : vector<24x243xf32> to vector<8x243xf32>
    %150 = arith.mulf %149, %78 : vector<8x243xf32>
    %151 = vector.extract_strided_slice %146 {offsets = [0, 0], sizes = [8, 243], strides = [1, 1]} : vector<24x243xf32> to vector<8x243xf32>
    %152 = arith.mulf %151, %148 : vector<8x243xf32>
    %153 = arith.addf %150, %152 : vector<8x243xf32>
    %154 = vector.extract_strided_slice %146 {offsets = [16, 0], sizes = [8, 243], strides = [1, 1]} : vector<24x243xf32> to vector<8x243xf32>
    %155 = math.tanh %153 : vector<8x243xf32>
    %156 = arith.mulf %154, %155 : vector<8x243xf32>
    %157 = vector.broadcast %4 : vector<1x243xf32> to vector<8x243xf32>
    %158 = arith.mulf %156, %157 : vector<8x243xf32>
    %c0_118 = arith.constant 0 : index
    %c0_119 = arith.constant 0 : index
    %159 = vector.load %arg6[%c0_118, %c0_119] : memref<8x8xf32, #tpu.memory_space<vmem>>, vector<8x8xf32>
    %cst_120 = arith.constant dense<0.000000e+00> : vector<8x243xf32>
    %160 = tpu.matmul %159, %158, %cst_120 {dimension_numbers = #tpu.dot_dimension_numbers<[1], [0], [0], [1], [0, 0, 1, 1], [], []>} : vector<8x8xf32>, vector<8x243xf32>, vector<8x243xf32> -> vector<8x243xf32>
    %c0_121 = arith.constant 0 : index
    %c0_122 = arith.constant 0 : index
    %161 = vector.load %arg7[%c0_121, %c0_122] : memref<8x1xf32, #tpu.memory_space<vmem>>, vector<8x1xf32>
    %162 = vector.broadcast %161 : vector<8x1xf32> to vector<8x243xf32>
    %163 = arith.addf %160, %162 : vector<8x243xf32>
    %164 = vector.extract_strided_slice %163 {offsets = [0, 0], sizes = [1, 243], strides = [1, 1]} : vector<8x243xf32> to vector<1x243xf32>
    %165 = vector.extract_strided_slice %163 {offsets = [1, 0], sizes = [1, 243], strides = [1, 1]} : vector<8x243xf32> to vector<1x243xf32>
    %166 = vector.extract_strided_slice %163 {offsets = [2, 0], sizes = [1, 243], strides = [1, 1]} : vector<8x243xf32> to vector<1x243xf32>
    %167 = vector.extract_strided_slice %163 {offsets = [3, 0], sizes = [1, 243], strides = [1, 1]} : vector<8x243xf32> to vector<1x243xf32>
    %168 = vector.extract_strided_slice %163 {offsets = [4, 0], sizes = [1, 243], strides = [1, 1]} : vector<8x243xf32> to vector<1x243xf32>
    %169 = vector.extract_strided_slice %163 {offsets = [5, 0], sizes = [1, 243], strides = [1, 1]} : vector<8x243xf32> to vector<1x243xf32>
    %170 = vector.extract_strided_slice %163 {offsets = [6, 0], sizes = [1, 243], strides = [1, 1]} : vector<8x243xf32> to vector<1x243xf32>
    %171 = vector.extract_strided_slice %163 {offsets = [7, 0], sizes = [1, 243], strides = [1, 1]} : vector<8x243xf32> to vector<1x243xf32>
    %172 = tpu.concatenate %164, %165, %166, %167, %168, %169, %170, %171 in 1 : vector<1x243xf32>, vector<1x243xf32>, vector<1x243xf32>, vector<1x243xf32>, vector<1x243xf32>, vector<1x243xf32>, vector<1x243xf32>, vector<1x243xf32> -> vector<1x1944xf32>
    %c0_123 = arith.constant 0 : index
    %c0_124 = arith.constant 0 : index
    %173 = vector.load %arg8[%c0_123, %c0_124] : memref<1944x30xf32, #tpu.memory_space<vmem>>, vector<1944x30xf32>
    %cst_125 = arith.constant dense<0.000000e+00> : vector<1x30xf32>
    %174 = tpu.matmul %172, %173, %cst_125 {dimension_numbers = #tpu.dot_dimension_numbers<[1], [0], [0], [1], [0, 0, 1, 1], [], []>} : vector<1x1944xf32>, vector<1944x30xf32>, vector<1x30xf32> -> vector<1x30xf32>
    %c0_126 = arith.constant 0 : index
    %c0_127 = arith.constant 0 : index
    %175 = vector.load %arg9[%c0_126, %c0_127] : memref<1x30xf32, #tpu.memory_space<vmem>>, vector<1x30xf32>
    %176 = arith.addf %174, %175 : vector<1x30xf32>
    %c0_128 = arith.constant 0 : index
    %c0_129 = arith.constant 0 : index
    %177 = vector.load %arg10[%c0_128, %c0_129] : memref<1x30xf32, #tpu.memory_space<vmem>>, vector<1x30xf32>
    tpu.vector_store %arg10[%c0_128, %c0_129], %176 {strides = array<i32>} : memref<1x30xf32, #tpu.memory_space<vmem>>, vector<1x30xf32>,
    return
  }
}

</mosaic_0001>

<llo_original>
// kernel: parsing_net_forward.1
$region0: #{parsing_net_forward.1}
  #allocation0 [shape = 'u32[]', space=smem, size = 0x4, offset = 0x4, fixed_abs, tag = 'smem constant byte address 0x4 - core index']
  #allocation1 [shape = 'u32[144,128]{1,0:T(1,128)}', space=vmem, size = 0x12000, scoped, tag = 'internal scratch']
  #allocation2 [shape = 'bf16[16,324]{1,0:T(16,128)(2,1)}', space=vmem, size = 0x3000, scoped, tag = 'scratch operand']
  #allocation3 [shape = 'bf16[16,324]{1,0:T(16,128)(2,1)}', space=vmem, size = 0x3000, scoped, tag = 'scratch operand']
  %s0 = inlined_call_operand.vmem [shape: bf16[2,4,243], index: 0, kind: input, shape index: {}]
  %s1 = inlined_call_operand.vmem [shape: f32[1,243], index: 1, kind: input, shape index: {}]
  %s2 = inlined_call_operand.vmem [shape: bf16[32,144], index: 2, kind: input, shape index: {}]
  %s3 = inlined_call_operand.vmem [shape: f32[32,1], index: 3, kind: input, shape index: {}]
  %s4 = inlined_call_operand.vmem [shape: bf16[32,144], index: 4, kind: input, shape index: {}]
  %s5 = inlined_call_operand.vmem [shape: f32[32,1], index: 5, kind: input, shape index: {}]
  %s6 = inlined_call_operand.vmem [shape: f32[8,8], index: 6, kind: input, shape index: {}]
  %s7 = inlined_call_operand.vmem [shape: f32[8,1], index: 7, kind: input, shape index: {}]
  %s8 = inlined_call_operand.vmem [shape: f32[1944,30], index: 8, kind: input, shape index: {}]
  %s9 = inlined_call_operand.vmem [shape: f32[1,30], index: 9, kind: input, shape index: {}]
  %s10 = inlined_call_operand.vmem [shape: f32[1,30], index: 10, kind: output, shape index: {}]
  %s11 = sld [smem:[#allocation0]]
  $region50: #{parsing_net_forward.1} parent=0
    _
  %s13 = ssub.s32 1, %s11
  %s14 = scalar_select 0, %s13, %s11
  // Predicated region
  $region2: #{parsing_net_forward.1} parent=0 // pred_check
    _
  $region3: #{parsing_net_forward.1} parent=0 // pred_check_branch
    %16 = sbr.rel (0) target = $region5
  $region4: #{parsing_net_forward.1} parent=0 // pred_region
    _
  $region5: #{parsing_net_forward.1} parent=0 // pred_fallthru
    _
  // Predicated region
  $region6: #{parsing_net_forward.1} parent=0 // pred_check
    _
  $region7: #{parsing_net_forward.1} parent=0 // pred_check_branch
    %18 = sbr.rel (0) target = $region9
  $region8: #{parsing_net_forward.1} parent=0 // pred_region
    _
  $region9: #{parsing_net_forward.1} parent=0 // pred_fallthru
    _
  // Predicated region
  $region10: #{parsing_net_forward.1} parent=0 // pred_check
    _
  $region11: #{parsing_net_forward.1} parent=0 // pred_check_branch
    %20 = sbr.rel (0) target = $region13
  $region12: #{parsing_net_forward.1} parent=0 // pred_region
    _
  $region13: #{parsing_net_forward.1} parent=0 // pred_fallthru
    _
  // Predicated region
  $region14: #{parsing_net_forward.1} parent=0 // pred_check
    _
  $region15: #{parsing_net_forward.1} parent=0 // pred_check_branch
    %22 = sbr.rel (0) target = $region17
  $region16: #{parsing_net_forward.1} parent=0 // pred_region
    _
  $region17: #{parsing_net_forward.1} parent=0 // pred_fallthru
    _
  // Predicated region
  $region18: #{parsing_net_forward.1} parent=0 // pred_check
    _
  $region19: #{parsing_net_forward.1} parent=0 // pred_check_branch
    %24 = sbr.rel (0) target = $region21
  $region20: #{parsing_net_forward.1} parent=0 // pred_region
    _
  $region21: #{parsing_net_forward.1} parent=0 // pred_fallthru
    _
  // Predicated region
  $region22: #{parsing_net_forward.1} parent=0 // pred_check
    _
  $region23: #{parsing_net_forward.1} parent=0 // pred_check_branch
    %26 = sbr.rel (0) target = $region25
  $region24: #{parsing_net_forward.1} parent=0 // pred_region
    _
  $region25: #{parsing_net_forward.1} parent=0 // pred_fallthru
    _
  // Predicated region
  $region26: #{parsing_net_forward.1} parent=0 // pred_check
    _
  $region27: #{parsing_net_forward.1} parent=0 // pred_check_branch
    %28 = sbr.rel (0) target = $region29
  $region28: #{parsing_net_forward.1} parent=0 // pred_region
    _
  $region29: #{parsing_net_forward.1} parent=0 // pred_fallthru
    _
  // Predicated region
  $region30: #{parsing_net_forward.1} parent=0 // pred_check
    _
  $region31: #{parsing_net_forward.1} parent=0 // pred_check_branch
    %30 = sbr.rel (0) target = $region33
  $region32: #{parsing_net_forward.1} parent=0 // pred_region
    _
  $region33: #{parsing_net_forward.1} parent=0 // pred_fallthru
    _
  // Predicated region
  $region34: #{parsing_net_forward.1} parent=0 // pred_check
    _
  $region35: #{parsing_net_forward.1} parent=0 // pred_check_branch
    %32 = sbr.rel (0) target = $region37
  $region36: #{parsing_net_forward.1} parent=0 // pred_region
    _
  $region37: #{parsing_net_forward.1} parent=0 // pred_fallthru
    _
  // Predicated region
  $region38: #{parsing_net_forward.1} parent=0 // pred_check
    _
  $region39: #{parsing_net_forward.1} parent=0 // pred_check_branch
    %34 = sbr.rel (0) target = $region41
  $region40: #{parsing_net_forward.1} parent=0 // pred_region
    _
  $region41: #{parsing_net_forward.1} parent=0 // pred_fallthru
    _
  %36 = vst [vmem:[#allocation2] sm:$0xff] 0
  %37 = vst [vmem:[#allocation2 + $0x8] sm:$0xff] 0
  %vm38 = vcmask 556032
  %39 = vst.msk [vmem:[#allocation2 + $0x10] sm:$0xff] %vm38, 0
  %40 = vst [vmem:[#allocation3] sm:$0xff] 0
  %41 = vst [vmem:[#allocation3 + $0x8] sm:$0xff] 0
  %42 = vst.msk [vmem:[#allocation3 + $0x10] sm:$0xff] %vm38, 0
  %v43 = vld [vmem:[%s1] sm:$0x3]
  %v44 = vld [vmem:[%s0] sm:$0xf]
  %v47 = vunpack.c.l.s4 1983009808
  %v48 = vunpack.c.0.s8 %v47
  %v49 = vlaneseq
  %v50 = vshrl.u32 %v49, 7
  %v51 = vsub.s32 %v48, %v50
  %v52 = vrot.slane %v44, %v51
  %v53 = vcombine.high %v52, %v52
  %54 = vrot.lane.b32.xlu0 %v52, 28
  %v55 = vpop.permute.xlu0 %54
  %56 = vrot.lane.b32.xlu0 %v53, 28
  %v57 = vpop.permute.xlu0 %56
  %vm58 = vcmask 228352
  %v59 = vsel %vm58, %v55, %v57
  %vm63 = vcmask 1041632
  %64 = vst.msk [vmem:[#allocation2] sm:$0x3] %vm63, %v55
  %65 = vst [vmem:[#allocation2 + $0x8] sm:$0x3] %v59
  %vm66 = vcmask 115712
  %67 = vst.msk [vmem:[#allocation2 + $0x10] sm:$0x3] %vm66, %v57
  %vm68 = vcmask 1045730
  %69 = vst.msk [vmem:[#allocation2] sm:$0x3c] %vm68, 0
  %70 = vst [vmem:[#allocation2 + $0x8] sm:$0x3c] 0
  %vm71 = vcmask 119810
  %72 = vst.msk [vmem:[#allocation2 + $0x10] sm:$0x3c] %vm71, 0
  %v73 = vld [vmem:[#allocation2] sm:$0xff]
  %v74 = vld [vmem:[#allocation2 + $0x8] sm:$0xff]
  %v75 = vld [vmem:[#allocation2 + $0x10] sm:$0xff]
  %78 = vrot.lane.b32.xlu0 %v73, 127
  %v79 = vpop.permute.xlu0 %78
  %80 = vrot.lane.b32.xlu0 %v74, 127
  %v81 = vpop.permute.xlu0 %80
  %vm82 = vcmask 1039360
  %v83 = vsel %vm82, %v79, %v81
  %86 = vrot.lane.b32.xlu0 %v73, 126
  %v87 = vpop.permute.xlu0 %86
  %88 = vrot.lane.b32.xlu0 %v74, 126
  %v89 = vpop.permute.xlu0 %88
  %vm90 = vcmask 1031168
  %v91 = vsel %vm90, %v87, %v89
  %95 = vrot.lane.b32.xlu0 %v73, 101
  %v96 = vpop.permute.xlu0 %95
  %97 = vrot.lane.b32.xlu0 %v74, 101
  %v98 = vpop.permute.xlu0 %97
  %99 = vrot.lane.b32.xlu0 %v75, 101
  %v100 = vpop.permute.xlu0 %99
  %vm101 = vcmask 826368
  %v102 = vsel %vm101, %v96, %v98
  %v103 = vsel %vm101, %v98, %v100
  %106 = vrot.lane.b32.xlu0 %v73, 100
  %v107 = vpop.permute.xlu0 %106
  %108 = vrot.lane.b32.xlu0 %v74, 100
  %v109 = vpop.permute.xlu0 %108
  %110 = vrot.lane.b32.xlu0 %v75, 100
  %v111 = vpop.permute.xlu0 %110
  %vm112 = vcmask 818176
  %v113 = vsel %vm112, %v107, %v109
  %v114 = vsel %vm112, %v109, %v111
  %117 = vrot.lane.b32.xlu0 %v73, 99
  %v118 = vpop.permute.xlu0 %117
  %119 = vrot.lane.b32.xlu0 %v74, 99
  %v120 = vpop.permute.xlu0 %119
  %121 = vrot.lane.b32.xlu0 %v75, 99
  %v122 = vpop.permute.xlu0 %121
  %vm123 = vcmask 809984
  %v124 = vsel %vm123, %v118, %v120
  %v125 = vsel %vm123, %v120, %v122
  %128 = vrot.lane.b32.xlu0 %v73, 74
  %v129 = vpop.permute.xlu0 %128
  %130 = vrot.lane.b32.xlu0 %v74, 74
  %v131 = vpop.permute.xlu0 %130
  %132 = vrot.lane.b32.xlu0 %v75, 74
  %v133 = vpop.permute.xlu0 %132
  %vm134 = vcmask 605184
  %v135 = vsel %vm134, %v129, %v131
  %v136 = vsel %vm134, %v131, %v133
  %139 = vrot.lane.b32.xlu0 %v73, 73
  %v140 = vpop.permute.xlu0 %139
  %141 = vrot.lane.b32.xlu0 %v74, 73
  %v142 = vpop.permute.xlu0 %141
  %143 = vrot.lane.b32.xlu0 %v75, 73
  %v144 = vpop.permute.xlu0 %143
  %vm145 = vcmask 596992
  %v146 = vsel %vm145, %v140, %v142
  %v147 = vsel %vm145, %v142, %v144
  %150 = vrot.lane.b32.xlu0 %v73, 72
  %v151 = vpop.permute.xlu0 %150
  %152 = vrot.lane.b32.xlu0 %v74, 72
  %v153 = vpop.permute.xlu0 %152
  %154 = vrot.lane.b32.xlu0 %v75, 72
  %v155 = vpop.permute.xlu0 %154
  %vm156 = vcmask 588800
  %v157 = vsel %vm156, %v151, %v153
  %v158 = vsel %vm156, %v153, %v155
  %v161 = vld [vmem:[%s2] sm:$0xff]
  %v162 = vld [vmem:[%s2 + $0x8] sm:$0xff]
  %v163 = vld [vmem:[%s2 + $0x10] sm:$0xff]
  %v164 = vld [vmem:[%s2 + $0x18] sm:$0xff]
  %v165 = vld [vmem:[%s3] sm:$0xff]
  %v166 = vld [vmem:[%s3 + $0x8] sm:$0xff]
  %v167 = vld [vmem:[%s3 + $0x10] sm:$0xff]
  %v168 = vld [vmem:[%s3 + $0x18] sm:$0xff]
  %170 = vset.pattern.permute.xlu0 0
  %171 = vperm.xlu0 %170, %v165
  %v172 = vpop.permute.xlu0 %171
  %175 = vset.pattern.permute.xlu0 0
  %176 = vperm.xlu0 %175, %v166
  %v177 = vpop.permute.xlu0 %176
  %180 = vset.pattern.permute.xlu0 0
  %181 = vperm.xlu0 %180, %v167
  %v182 = vpop.permute.xlu0 %181
  %185 = vset.pattern.permute.xlu0 0
  %186 = vperm.xlu0 %185, %v168
  %v187 = vpop.permute.xlu0 %186
  %v193 = vunpack.c.l.b16 %v161
  %v194 = vunpack.c.h.b16 %v161
  %v195 = vunpack.c.l.b16 %v162
  %v196 = vunpack.c.h.b16 %v162
  %v197 = vunpack.c.l.b16 %v163
  %v198 = vunpack.c.h.b16 %v163
  %v199 = vunpack.c.l.b16 %v164
  %v200 = vunpack.c.h.b16 %v164
  %v201 = vpack.c.b16 %v195, %v193
  %v202 = vpack.c.b16 %v196, %v194
  %v203 = vpack.c.b16 %v199, %v197
  %v204 = vpack.c.b16 %v200, %v198
  %vm207 = vcmask 130048
  %v209 = vsel %vm207, %v202, 0
  %v212 = vsel %vm207, %v204, 0
  %214 = vmatprep.subr.bf16.mxu0 %v74
  %215 = vmatpush1.bf16.msra.mxu0 %v73
  %216 = vmatprep.subr.bf16.mxu0 %v81
  %217 = vmatpush1.bf16.msra.mxu0 %v83
  %218 = vmatprep.subr.bf16.mxu0 %v89
  %219 = vmatpush1.bf16.msra.mxu0 %v91
  %220 = vmatprep.subr.bf16.mxu0 %v103
  %221 = vmatpush1.bf16.msra.mxu0 %v102
  %222 = vmatprep.subr.bf16.mxu0 %v114
  %223 = vmatpush1.bf16.msra.mxu0 %v113
  %224 = vmatprep.subr.bf16.mxu0 %v125
  %225 = vmatpush1.bf16.msra.mxu0 %v124
  %226 = vmatprep.subr.bf16.mxu0 %v136
  %227 = vmatpush1.bf16.msra.mxu0 %v135
  %228 = vmatprep.subr.bf16.mxu0 %v147
  %229 = vmatpush1.bf16.msra.mxu0 %v146
  %230 = vmatprep.subr.bf16.mxu0 %v158
  %231 = vmatpush1.bf16.msra.mxu0 %v157
  %232 = vmatprep.subr.bf16.mxu0 0
  %233 = vmatpush1.bf16.msra.mxu0 0
  %234 = vmatprep.subr.bf16.mxu0 0
  %235 = vmatpush1.bf16.msra.mxu0 0
  %236 = vmatprep.subr.bf16.mxu0 0
  %237 = vmatpush1.bf16.msra.mxu0 0
  %238 = vmatprep.subr.bf16.mxu0 0
  %239 = vmatpush1.bf16.msra.mxu0 0
  %240 = vmatprep.subr.bf16.mxu0 0
  %241 = vmatpush1.bf16.msra.mxu0 0
  %242 = vmatprep.subr.bf16.mxu0 0
  %243 = vmatpush1.bf16.msra.mxu0 0
  %244 = vmatprep.subr.bf16.mxu0 0
  %245 = vmatpush1.bf16.msra.mxu0 0
  %246 = vmatprep.mubr.bf16.mxu0 %v209
  %247 = vmatmul.mubr.bf16.gmra.mrb[0].mxu0 %v201
  %v248 = vpop.f32.mrb[0].mxu0
  %v249 = vadd.f32 %v172, %v248
  %v250 = vpop.f32.mrb[0].mxu0
  %v251 = vadd.f32 %v172, %v250
  %v252 = vpop.f32.mrb[0].mxu0
  %v253 = vadd.f32 %v177, %v252
  %v254 = vpop.f32.mrb[0].mxu0
  %v255 = vadd.f32 %v177, %v254
  %256 = vmatprep.mubr.bf16.mxu0 %v212
  %257 = vmatmul.mubr.bf16.gmra.mrb[0].mxu0 %v203
  %v258 = vpop.f32.mrb[0].mxu0
  %v259 = vadd.f32 %v182, %v258
  %v260 = vpop.f32.mrb[0].mxu0
  %v261 = vadd.f32 %v182, %v260
  %v262 = vpop.f32.mrb[0].mxu0
  %v263 = vadd.f32 %v187, %v262
  %v264 = vpop.f32.mrb[0].mxu0
  %v265 = vadd.f32 %v187, %v264
  %266 = vdwg.mxu0
  %v267 = vxor.u32 %v249, 2147483648
  %v268 = vxor.u32 %v251, 2147483648
  %v269 = vxor.u32 %v253, 2147483648
  %v270 = vxor.u32 %v255, 2147483648
  %v271 = vxor.u32 %v259, 2147483648
  %v272 = vxor.u32 %v261, 2147483648
  %v273 = vmul.f32 %v267, 1.442695
  %v274 = vpow.pop %v273
  %v275 = vmul.f32 %v268, 1.442695
  %v276 = vpow.pop %v275
  %v277 = vmul.f32 %v269, 1.442695
  %v278 = vpow.pop %v277
  %v279 = vmul.f32 %v270, 1.442695
  %v280 = vpow.pop %v279
  %v281 = vmul.f32 %v271, 1.442695
  %v282 = vpow.pop %v281
  %v283 = vmul.f32 %v272, 1.442695
  %v284 = vpow.pop %v283
  %v285 = vadd.f32 %v274, 1.0
  %v286 = vadd.f32 %v276, 1.0
  %v287 = vadd.f32 %v278, 1.0
  %v288 = vadd.f32 %v280, 1.0
  %v289 = vadd.f32 %v282, 1.0
  %v290 = vadd.f32 %v284, 1.0
  %v291 = vrcp.pop %v285
  %v292 = vmul.f32 1.0, %v291
  %v293 = vrcp.pop %v286
  %v294 = vmul.f32 1.0, %v293
  %v295 = vrcp.pop %v287
  %v296 = vmul.f32 1.0, %v295
  %v297 = vrcp.pop %v288
  %v298 = vmul.f32 1.0, %v297
  %v299 = vrcp.pop %v289
  %v300 = vmul.f32 1.0, %v299
  %v301 = vrcp.pop %v290
  %v302 = vmul.f32 1.0, %v301
  %v303 = vtanh.pop %v263
  %v304 = vtanh.pop %v265
  %v305 = vmul.f32 %v296, 0.0
  %v306 = vmul.f32 %v298, 0.0
  %v307 = vmul.f32 %v292, %v303
  %v308 = vmul.f32 %v294, %v304
  %v309 = vadd.f32 %v305, %v307
  %v310 = vadd.f32 %v306, %v308
  %v311 = vtanh.pop %v309
  %v312 = vtanh.pop %v310
  %v313 = vmul.f32 %v300, %v311
  %v314 = vmul.f32 %v302, %v312
  %v316 = vlaneseq
  %v317 = vshrl.u32 %v316, 7
  %v318 = vsub.s32 0, %v317
  %v319 = vrot.slane %v43, %v318
  %v320 = vlaneseq
  %v321 = vshrl.u32 %v320, 7
  %v322 = vsub.s32 1, %v321
  %v323 = vrot.slane %v43, %v322
  %v326 = vmul.f32 %v313, %v319
  %v327 = vmul.f32 %v314, %v323
  %v328 = vpack.c.bf16 %v326, %v326
  %v329 = vpack.c.bf16 %v327, %v327
  %332 = vrot.lane.b32.xlu0 %v328, 28
  %v333 = vpop.permute.xlu0 %332
  %334 = vrot.lane.b32.xlu0 %v329, 28
  %v335 = vpop.permute.xlu0 %334
  %v336 = vsel %vm58, %v333, %v335
  %vm340 = vcmask 1043680
  %341 = vst.msk [vmem:[#allocation3] sm:$0xf] %vm340, %v333
  %342 = vst [vmem:[#allocation3 + $0x8] sm:$0xf] %v336
  %vm343 = vcmask 117760
  %344 = vst.msk [vmem:[#allocation3 + $0x10] sm:$0xf] %vm343, %v335
  %vm345 = vcmask 1047780
  %346 = vst.msk [vmem:[#allocation3] sm:$0xf0] %vm345, 0
  %347 = vst [vmem:[#allocation3 + $0x8] sm:$0xf0] 0
  %vm348 = vcmask 121860
  %349 = vst.msk [vmem:[#allocation3 + $0x10] sm:$0xf0] %vm348, 0
  %v350 = vld [vmem:[#allocation3] sm:$0xff]
  %v351 = vld [vmem:[#allocation3 + $0x8] sm:$0xff]
  %v352 = vld [vmem:[#allocation3 + $0x10] sm:$0xff]
  %355 = vrot.lane.b32.xlu0 %v350, 127
  %v356 = vpop.permute.xlu0 %355
  %357 = vrot.lane.b32.xlu0 %v351, 127
  %v358 = vpop.permute.xlu0 %357
  %v359 = vsel %vm82, %v356, %v358
  %362 = vrot.lane.b32.xlu0 %v350, 126
  %v363 = vpop.permute.xlu0 %362
  %364 = vrot.lane.b32.xlu0 %v351, 126
  %v365 = vpop.permute.xlu0 %364
  %v366 = vsel %vm90, %v363, %v365
  %370 = vrot.lane.b32.xlu0 %v350, 101
  %v371 = vpop.permute.xlu0 %370
  %372 = vrot.lane.b32.xlu0 %v351, 101
  %v373 = vpop.permute.xlu0 %372
  %374 = vrot.lane.b32.xlu0 %v352, 101
  %v375 = vpop.permute.xlu0 %374
  %v376 = vsel %vm101, %v371, %v373
  %v377 = vsel %vm101, %v373, %v375
  %380 = vrot.lane.b32.xlu0 %v350, 100
  %v381 = vpop.permute.xlu0 %380
  %382 = vrot.lane.b32.xlu0 %v351, 100
  %v383 = vpop.permute.xlu0 %382
  %384 = vrot.lane.b32.xlu0 %v352, 100
  %v385 = vpop.permute.xlu0 %384
  %v386 = vsel %vm112, %v381, %v383
  %v387 = vsel %vm112, %v383, %v385
  %390 = vrot.lane.b32.xlu0 %v350, 99
  %v391 = vpop.permute.xlu0 %390
  %392 = vrot.lane.b32.xlu0 %v351, 99
  %v393 = vpop.permute.xlu0 %392
  %394 = vrot.lane.b32.xlu0 %v352, 99
  %v395 = vpop.permute.xlu0 %394
  %v396 = vsel %vm123, %v391, %v393
  %v397 = vsel %vm123, %v393, %v395
  %400 = vrot.lane.b32.xlu0 %v350, 74
  %v401 = vpop.permute.xlu0 %400
  %402 = vrot.lane.b32.xlu0 %v351, 74
  %v403 = vpop.permute.xlu0 %402
  %404 = vrot.lane.b32.xlu0 %v352, 74
  %v405 = vpop.permute.xlu0 %404
  %v406 = vsel %vm134, %v401, %v403
  %v407 = vsel %vm134, %v403, %v405
  %410 = vrot.lane.b32.xlu0 %v350, 73
  %v411 = vpop.permute.xlu0 %410
  %412 = vrot.lane.b32.xlu0 %v351, 73
  %v413 = vpop.permute.xlu0 %412
  %414 = vrot.lane.b32.xlu0 %v352, 73
  %v415 = vpop.permute.xlu0 %414
  %v416 = vsel %vm145, %v411, %v413
  %v417 = vsel %vm145, %v413, %v415
  %420 = vrot.lane.b32.xlu0 %v350, 72
  %v421 = vpop.permute.xlu0 %420
  %422 = vrot.lane.b32.xlu0 %v351, 72
  %v423 = vpop.permute.xlu0 %422
  %424 = vrot.lane.b32.xlu0 %v352, 72
  %v425 = vpop.permute.xlu0 %424
  %v426 = vsel %vm156, %v421, %v423
  %v427 = vsel %vm156, %v423, %v425
  %v430 = vld [vmem:[%s4] sm:$0xff]
  %v431 = vld [vmem:[%s4 + $0x8] sm:$0xff]
  %v432 = vld [vmem:[%s4 + $0x10] sm:$0xff]
  %v433 = vld [vmem:[%s4 + $0x18] sm:$0xff]
  %v434 = vld [vmem:[%s5] sm:$0xff]
  %v435 = vld [vmem:[%s5 + $0x8] sm:$0xff]
  %v436 = vld [vmem:[%s5 + $0x10] sm:$0xff]
  %v437 = vld [vmem:[%s5 + $0x18] sm:$0xff]
  %439 = vset.pattern.permute.xlu0 0
  %440 = vperm.xlu0 %439, %v434
  %v441 = vpop.permute.xlu0 %440
  %444 = vset.pattern.permute.xlu0 0
  %445 = vperm.xlu0 %444, %v435
  %v446 = vpop.permute.xlu0 %445
  %449 = vset.pattern.permute.xlu0 0
  %450 = vperm.xlu0 %449, %v436
  %v451 = vpop.permute.xlu0 %450
  %454 = vset.pattern.permute.xlu0 0
  %455 = vperm.xlu0 %454, %v437
  %v456 = vpop.permute.xlu0 %455
  %v462 = vunpack.c.l.b16 %v430
  %v463 = vunpack.c.h.b16 %v430
  %v464 = vunpack.c.l.b16 %v431
  %v465 = vunpack.c.h.b16 %v431
  %v466 = vunpack.c.l.b16 %v432
  %v467 = vunpack.c.h.b16 %v432
  %v468 = vunpack.c.l.b16 %v433
  %v469 = vunpack.c.h.b16 %v433
  %v470 = vpack.c.b16 %v464, %v462
  %v471 = vpack.c.b16 %v465, %v463
  %v472 = vpack.c.b16 %v468, %v466
  %v473 = vpack.c.b16 %v469, %v467
  %v477 = vsel %vm207, %v471, 0
  %v480 = vsel %vm207, %v473, 0
  %482 = vmatprep.subr.bf16.mxu0 %v351
  %483 = vmatpush1.bf16.msra.mxu0 %v350
  %484 = vmatprep.subr.bf16.mxu0 %v358
  %485 = vmatpush1.bf16.msra.mxu0 %v359
  %486 = vmatprep.subr.bf16.mxu0 %v365
  %487 = vmatpush1.bf16.msra.mxu0 %v366
  %488 = vmatprep.subr.bf16.mxu0 %v377
  %489 = vmatpush1.bf16.msra.mxu0 %v376
  %490 = vmatprep.subr.bf16.mxu0 %v387
  %491 = vmatpush1.bf16.msra.mxu0 %v386
  %492 = vmatprep.subr.bf16.mxu0 %v397
  %493 = vmatpush1.bf16.msra.mxu0 %v396
  %494 = vmatprep.subr.bf16.mxu0 %v407
  %495 = vmatpush1.bf16.msra.mxu0 %v406
  %496 = vmatprep.subr.bf16.mxu0 %v417
  %497 = vmatpush1.bf16.msra.mxu0 %v416
  %498 = vmatprep.subr.bf16.mxu0 %v427
  %499 = vmatpush1.bf16.msra.mxu0 %v426
  %500 = vmatprep.subr.bf16.mxu0 0
  %501 = vmatpush1.bf16.msra.mxu0 0
  %502 = vmatprep.subr.bf16.mxu0 0
  %503 = vmatpush1.bf16.msra.mxu0 0
  %504 = vmatprep.subr.bf16.mxu0 0
  %505 = vmatpush1.bf16.msra.mxu0 0
  %506 = vmatprep.subr.bf16.mxu0 0
  %507 = vmatpush1.bf16.msra.mxu0 0
  %508 = vmatprep.subr.bf16.mxu0 0
  %509 = vmatpush1.bf16.msra.mxu0 0
  %510 = vmatprep.subr.bf16.mxu0 0
  %511 = vmatpush1.bf16.msra.mxu0 0
  %512 = vmatprep.subr.bf16.mxu0 0
  %513 = vmatpush1.bf16.msra.mxu0 0
  %514 = vmatprep.mubr.bf16.mxu0 %v477
  %515 = vmatmul.mubr.bf16.gmra.mrb[0].mxu0 %v470
  %v516 = vpop.f32.mrb[0].mxu0
  %v517 = vadd.f32 %v441, %v516
  %v518 = vpop.f32.mrb[0].mxu0
  %v519 = vadd.f32 %v441, %v518
  %v520 = vpop.f32.mrb[0].mxu0
  %v521 = vadd.f32 %v446, %v520
  %v522 = vpop.f32.mrb[0].mxu0
  %v523 = vadd.f32 %v446, %v522
  %524 = vmatprep.mubr.bf16.mxu0 %v480
  %525 = vmatmul.mubr.bf16.gmra.mrb[0].mxu0 %v472
  %v526 = vpop.f32.mrb[0].mxu0
  %v527 = vadd.f32 %v451, %v526
  %v528 = vpop.f32.mrb[0].mxu0
  %v529 = vadd.f32 %v451, %v528
  %v530 = vpop.f32.mrb[0].mxu0
  %v531 = vadd.f32 %v456, %v530
  %v532 = vpop.f32.mrb[0].mxu0
  %v533 = vadd.f32 %v456, %v532
  %534 = vdwg.mxu0
  %v535 = vxor.u32 %v517, 2147483648
  %v536 = vxor.u32 %v519, 2147483648
  %v537 = vxor.u32 %v521, 2147483648
  %v538 = vxor.u32 %v523, 2147483648
  %v539 = vxor.u32 %v527, 2147483648
  %v540 = vxor.u32 %v529, 2147483648
  %v541 = vmul.f32 %v535, 1.442695
  %v542 = vpow.pop %v541
  %v543 = vmul.f32 %v536, 1.442695
  %v544 = vpow.pop %v543
  %v545 = vmul.f32 %v537, 1.442695
  %v546 = vpow.pop %v545
  %v547 = vmul.f32 %v538, 1.442695
  %v548 = vpow.pop %v547
  %v549 = vmul.f32 %v539, 1.442695
  %v550 = vpow.pop %v549
  %v551 = vmul.f32 %v540, 1.442695
  %v552 = vpow.pop %v551
  %v553 = vadd.f32 %v542, 1.0
  %v554 = vadd.f32 %v544, 1.0
  %v555 = vadd.f32 %v546, 1.0
  %v556 = vadd.f32 %v548, 1.0
  %v557 = vadd.f32 %v550, 1.0
  %v558 = vadd.f32 %v552, 1.0
  %v559 = vrcp.pop %v553
  %v560 = vmul.f32 1.0, %v559
  %v561 = vrcp.pop %v554
  %v562 = vmul.f32 1.0, %v561
  %v563 = vrcp.pop %v555
  %v564 = vmul.f32 1.0, %v563
  %v565 = vrcp.pop %v556
  %v566 = vmul.f32 1.0, %v565
  %v567 = vrcp.pop %v557
  %v568 = vmul.f32 1.0, %v567
  %v569 = vrcp.pop %v558
  %v570 = vmul.f32 1.0, %v569
  %v571 = vtanh.pop %v531
  %v572 = vtanh.pop %v533
  %v573 = vmul.f32 %v564, 0.0
  %v574 = vmul.f32 %v566, 0.0
  %v575 = vmul.f32 %v560, %v571
  %v576 = vmul.f32 %v562, %v572
  %v577 = vadd.f32 %v573, %v575
  %v578 = vadd.f32 %v574, %v576
  %v579 = vtanh.pop %v577
  %v580 = vtanh.pop %v578
  %v581 = vmul.f32 %v568, %v579
  %v582 = vmul.f32 %v570, %v580
  %v583 = vmul.f32 %v581, %v319
  %v584 = vmul.f32 %v582, %v323
  %s585 = scalar_lea.vmem %s0, 4
  %v586 = vld [vmem:[%s585] sm:$0xf]
  %v589 = vunpack.c.l.s4 1983009808
  %v590 = vunpack.c.0.s8 %v589
  %v591 = vlaneseq
  %v592 = vshrl.u32 %v591, 7
  %v593 = vsub.s32 %v590, %v592
  %v594 = vrot.slane %v586, %v593
  %v595 = vcombine.high %v594, %v594
  %596 = vrot.lane.b32.xlu0 %v594, 28
  %v597 = vpop.permute.xlu0 %596
  %598 = vrot.lane.b32.xlu0 %v595, 28
  %v599 = vpop.permute.xlu0 %598
  %v600 = vsel %vm58, %v597, %v599
  %604 = vst.msk [vmem:[#allocation2] sm:$0x3] %vm63, %v597
  %605 = vst [vmem:[#allocation2 + $0x8] sm:$0x3] %v600
  %606 = vst.msk [vmem:[#allocation2 + $0x10] sm:$0x3] %vm66, %v599
  %v607 = vrot.slane %v328, 6
  %v608 = vrot.slane %v329, 6
  %609 = vrot.lane.b32.xlu0 %v607, 28
  %v610 = vpop.permute.xlu0 %609
  %611 = vrot.lane.b32.xlu0 %v608, 28
  %v612 = vpop.permute.xlu0 %611
  %v613 = vsel %vm58, %v610, %v612
  %617 = vst.msk [vmem:[#allocation2] sm:$0x3c] %vm68, %v610
  %618 = vst [vmem:[#allocation2 + $0x8] sm:$0x3c] %v613
  %619 = vst.msk [vmem:[#allocation2 + $0x10] sm:$0x3c] %vm71, %v612
  %v620 = vld [vmem:[#allocation2] sm:$0xff]
  %v621 = vld [vmem:[#allocation2 + $0x8] sm:$0xff]
  %v622 = vld [vmem:[#allocation2 + $0x10] sm:$0xff]
  %625 = vrot.lane.b32.xlu0 %v620, 127
  %v626 = vpop.permute.xlu0 %625
  %627 = vrot.lane.b32.xlu0 %v621, 127
  %v628 = vpop.permute.xlu0 %627
  %v629 = vsel %vm82, %v626, %v628
  %632 = vrot.lane.b32.xlu0 %v620, 126
  %v633 = vpop.permute.xlu0 %632
  %634 = vrot.lane.b32.xlu0 %v621, 126
  %v635 = vpop.permute.xlu0 %634
  %v636 = vsel %vm90, %v633, %v635
  %640 = vrot.lane.b32.xlu0 %v620, 101
  %v641 = vpop.permute.xlu0 %640
  %642 = vrot.lane.b32.xlu0 %v621, 101
  %v643 = vpop.permute.xlu0 %642
  %644 = vrot.lane.b32.xlu0 %v622, 101
  %v645 = vpop.permute.xlu0 %644
  %v646 = vsel %vm101, %v641, %v643
  %v647 = vsel %vm101, %v643, %v645
  %650 = vrot.lane.b32.xlu0 %v620, 100
  %v651 = vpop.permute.xlu0 %650
  %652 = vrot.lane.b32.xlu0 %v621, 100
  %v653 = vpop.permute.xlu0 %652
  %654 = vrot.lane.b32.xlu0 %v622, 100
  %v655 = vpop.permute.xlu0 %654
  %v656 = vsel %vm112, %v651, %v653
  %v657 = vsel %vm112, %v653, %v655
  %660 = vrot.lane.b32.xlu0 %v620, 99
  %v661 = vpop.permute.xlu0 %660
  %662 = vrot.lane.b32.xlu0 %v621, 99
  %v663 = vpop.permute.xlu0 %662
  %664 = vrot.lane.b32.xlu0 %v622, 99
  %v665 = vpop.permute.xlu0 %664
  %v666 = vsel %vm123, %v661, %v663
  %v667 = vsel %vm123, %v663, %v665
  %670 = vrot.lane.b32.xlu0 %v620, 74
  %v671 = vpop.permute.xlu0 %670
  %672 = vrot.lane.b32.xlu0 %v621, 74
  %v673 = vpop.permute.xlu0 %672
  %674 = vrot.lane.b32.xlu0 %v622, 74
  %v675 = vpop.permute.xlu0 %674
  %v676 = vsel %vm134, %v671, %v673
  %v677 = vsel %vm134, %v673, %v675
  %680 = vrot.lane.b32.xlu0 %v620, 73
  %v681 = vpop.permute.xlu0 %680
  %682 = vrot.lane.b32.xlu0 %v621, 73
  %v683 = vpop.permute.xlu0 %682
  %684 = vrot.lane.b32.xlu0 %v622, 73
  %v685 = vpop.permute.xlu0 %684
  %v686 = vsel %vm145, %v681, %v683
  %v687 = vsel %vm145, %v683, %v685
  %690 = vrot.lane.b32.xlu0 %v620, 72
  %v691 = vpop.permute.xlu0 %690
  %692 = vrot.lane.b32.xlu0 %v621, 72
  %v693 = vpop.permute.xlu0 %692
  %694 = vrot.lane.b32.xlu0 %v622, 72
  %v695 = vpop.permute.xlu0 %694
  %v696 = vsel %vm156, %v691, %v693
  %v697 = vsel %vm156, %v693, %v695
  %v700 = vld [vmem:[%s2] sm:$0xff]
  %v701 = vld [vmem:[%s2 + $0x8] sm:$0xff]
  %v702 = vld [vmem:[%s2 + $0x10] sm:$0xff]
  %v703 = vld [vmem:[%s2 + $0x18] sm:$0xff]
  %v704 = vld [vmem:[%s3] sm:$0xff]
  %v705 = vld [vmem:[%s3 + $0x8] sm:$0xff]
  %v706 = vld [vmem:[%s3 + $0x10] sm:$0xff]
  %v707 = vld [vmem:[%s3 + $0x18] sm:$0xff]
  %709 = vset.pattern.permute.xlu0 0
  %710 = vperm.xlu0 %709, %v704
  %v711 = vpop.permute.xlu0 %710
  %714 = vset.pattern.permute.xlu0 0
  %715 = vperm.xlu0 %714, %v705
  %v716 = vpop.permute.xlu0 %715
  %719 = vset.pattern.permute.xlu0 0
  %720 = vperm.xlu0 %719, %v706
  %v721 = vpop.permute.xlu0 %720
  %724 = vset.pattern.permute.xlu0 0
  %725 = vperm.xlu0 %724, %v707
  %v726 = vpop.permute.xlu0 %725
  %v732 = vunpack.c.l.b16 %v700
  %v733 = vunpack.c.h.b16 %v700
  %v734 = vunpack.c.l.b16 %v701
  %v735 = vunpack.c.h.b16 %v701
  %v736 = vunpack.c.l.b16 %v702
  %v737 = vunpack.c.h.b16 %v702
  %v738 = vunpack.c.l.b16 %v703
  %v739 = vunpack.c.h.b16 %v703
  %v740 = vpack.c.b16 %v734, %v732
  %v741 = vpack.c.b16 %v735, %v733
  %v742 = vpack.c.b16 %v738, %v736
  %v743 = vpack.c.b16 %v739, %v737
  %v747 = vsel %vm207, %v741, 0
  %v750 = vsel %vm207, %v743, 0
  %752 = vmatprep.subr.bf16.mxu0 %v621
  %753 = vmatpush1.bf16.msra.mxu0 %v620
  %754 = vmatprep.subr.bf16.mxu0 %v628
  %755 = vmatpush1.bf16.msra.mxu0 %v629
  %756 = vmatprep.subr.bf16.mxu0 %v635
  %757 = vmatpush1.bf16.msra.mxu0 %v636
  %758 = vmatprep.subr.bf16.mxu0 %v647
  %759 = vmatpush1.bf16.msra.mxu0 %v646
  %760 = vmatprep.subr.bf16.mxu0 %v657
  %761 = vmatpush1.bf16.msra.mxu0 %v656
  %762 = vmatprep.subr.bf16.mxu0 %v667
  %763 = vmatpush1.bf16.msra.mxu0 %v666
  %764 = vmatprep.subr.bf16.mxu0 %v677
  %765 = vmatpush1.bf16.msra.mxu0 %v676
  %766 = vmatprep.subr.bf16.mxu0 %v687
  %767 = vmatpush1.bf16.msra.mxu0 %v686
  %768 = vmatprep.subr.bf16.mxu0 %v697
  %769 = vmatpush1.bf16.msra.mxu0 %v696
  %770 = vmatprep.subr.bf16.mxu0 0
  %771 = vmatpush1.bf16.msra.mxu0 0
  %772 = vmatprep.subr.bf16.mxu0 0
  %773 = vmatpush1.bf16.msra.mxu0 0
  %774 = vmatprep.subr.bf16.mxu0 0
  %775 = vmatpush1.bf16.msra.mxu0 0
  %776 = vmatprep.subr.bf16.mxu0 0
  %777 = vmatpush1.bf16.msra.mxu0 0
  %778 = vmatprep.subr.bf16.mxu0 0
  %779 = vmatpush1.bf16.msra.mxu0 0
  %780 = vmatprep.subr.bf16.mxu0 0
  %781 = vmatpush1.bf16.msra.mxu0 0
  %782 = vmatprep.subr.bf16.mxu0 0
  %783 = vmatpush1.bf16.msra.mxu0 0
  %784 = vmatprep.mubr.bf16.mxu0 %v747
  %785 = vmatmul.mubr.bf16.gmra.mrb[0].mxu0 %v740
  %v786 = vpop.f32.mrb[0].mxu0
  %v787 = vadd.f32 %v711, %v786
  %v788 = vpop.f32.mrb[0].mxu0
  %v789 = vadd.f32 %v711, %v788
  %v790 = vpop.f32.mrb[0].mxu0
  %v791 = vadd.f32 %v716, %v790
  %v792 = vpop.f32.mrb[0].mxu0
  %v793 = vadd.f32 %v716, %v792
  %794 = vmatprep.mubr.bf16.mxu0 %v750
  %795 = vmatmul.mubr.bf16.gmra.mrb[0].mxu0 %v742
  %v796 = vpop.f32.mrb[0].mxu0
  %v797 = vadd.f32 %v721, %v796
  %v798 = vpop.f32.mrb[0].mxu0
  %v799 = vadd.f32 %v721, %v798
  %v800 = vpop.f32.mrb[0].mxu0
  %v801 = vadd.f32 %v726, %v800
  %v802 = vpop.f32.mrb[0].mxu0
  %v803 = vadd.f32 %v726, %v802
  %804 = vdwg.mxu0
  %v805 = vxor.u32 %v787, 2147483648
  %v806 = vxor.u32 %v789, 2147483648
  %v807 = vxor.u32 %v791, 2147483648
  %v808 = vxor.u32 %v793, 2147483648
  %v809 = vxor.u32 %v797, 2147483648
  %v810 = vxor.u32 %v799, 2147483648
  %v811 = vmul.f32 %v805, 1.442695
  %v812 = vpow.pop %v811
  %v813 = vmul.f32 %v806, 1.442695
  %v814 = vpow.pop %v813
  %v815 = vmul.f32 %v807, 1.442695
  %v816 = vpow.pop %v815
  %v817 = vmul.f32 %v808, 1.442695
  %v818 = vpow.pop %v817
  %v819 = vmul.f32 %v809, 1.442695
  %v820 = vpow.pop %v819
  %v821 = vmul.f32 %v810, 1.442695
  %v822 = vpow.pop %v821
  %v823 = vadd.f32 %v812, 1.0
  %v824 = vadd.f32 %v814, 1.0
  %v825 = vadd.f32 %v816, 1.0
  %v826 = vadd.f32 %v818, 1.0
  %v827 = vadd.f32 %v820, 1.0
  %v828 = vadd.f32 %v822, 1.0
  %v829 = vrcp.pop %v823
  %v830 = vmul.f32 1.0, %v829
  %v831 = vrcp.pop %v824
  %v832 = vmul.f32 1.0, %v831
  %v833 = vrcp.pop %v825
  %v834 = vmul.f32 1.0, %v833
  %v835 = vrcp.pop %v826
  %v836 = vmul.f32 1.0, %v835
  %v837 = vrcp.pop %v827
  %v838 = vmul.f32 1.0, %v837
  %v839 = vrcp.pop %v828
  %v840 = vmul.f32 1.0, %v839
  %v841 = vtanh.pop %v801
  %v842 = vtanh.pop %v803
  %v843 = vmul.f32 %v834, %v309
  %v844 = vmul.f32 %v836, %v310
  %v845 = vmul.f32 %v830, %v841
  %v846 = vmul.f32 %v832, %v842
  %v847 = vadd.f32 %v843, %v845
  %v848 = vadd.f32 %v844, %v846
  %v849 = vtanh.pop %v847
  %v850 = vtanh.pop %v848
  %v851 = vmul.f32 %v838, %v849
  %v852 = vmul.f32 %v840, %v850
  %v853 = vmul.f32 %v851, %v319
  %v854 = vmul.f32 %v852, %v323
  %v855 = vpack.c.bf16 %v853, %v853
  %v856 = vpack.c.bf16 %v854, %v854
  %859 = vrot.lane.b32.xlu0 %v855, 28
  %v860 = vpop.permute.xlu0 %859
  %861 = vrot.lane.b32.xlu0 %v856, 28
  %v862 = vpop.permute.xlu0 %861
  %v863 = vsel %vm58, %v860, %v862
  %867 = vst.msk [vmem:[#allocation3] sm:$0xf] %vm340, %v860
  %868 = vst [vmem:[#allocation3 + $0x8] sm:$0xf] %v863
  %869 = vst.msk [vmem:[#allocation3 + $0x10] sm:$0xf] %vm343, %v862
  %v870 = vpack.c.bf16 %v583, %v583
  %v871 = vpack.c.bf16 %v584, %v584
  %v874 = vrot.slane %v870, 4
  %v875 = vrot.slane %v871, 4
  %876 = vrot.lane.b32.xlu0 %v874, 28
  %v877 = vpop.permute.xlu0 %876
  %878 = vrot.lane.b32.xlu0 %v875, 28
  %v879 = vpop.permute.xlu0 %878
  %v880 = vsel %vm58, %v877, %v879
  %884 = vst.msk [vmem:[#allocation3] sm:$0xf0] %vm345, %v877
  %885 = vst [vmem:[#allocation3 + $0x8] sm:$0xf0] %v880
  %886 = vst.msk [vmem:[#allocation3 + $0x10] sm:$0xf0] %vm348, %v879
  %v887 = vld [vmem:[#allocation3] sm:$0xff]
  %v888 = vld [vmem:[#allocation3 + $0x8] sm:$0xff]
  %v889 = vld [vmem:[#allocation3 + $0x10] sm:$0xff]
  %892 = vrot.lane.b32.xlu0 %v887, 127
  %v893 = vpop.permute.xlu0 %892
  %894 = vrot.lane.b32.xlu0 %v888, 127
  %v895 = vpop.permute.xlu0 %894
  %v896 = vsel %vm82, %v893, %v895
  %899 = vrot.lane.b32.xlu0 %v887, 126
  %v900 = vpop.permute.xlu0 %899
  %901 = vrot.lane.b32.xlu0 %v888, 126
  %v902 = vpop.permute.xlu0 %901
  %v903 = vsel %vm90, %v900, %v902
  %907 = vrot.lane.b32.xlu0 %v887, 101
  %v908 = vpop.permute.xlu0 %907
  %909 = vrot.lane.b32.xlu0 %v888, 101
  %v910 = vpop.permute.xlu0 %909
  %911 = vrot.lane.b32.xlu0 %v889, 101
  %v912 = vpop.permute.xlu0 %911
  %v913 = vsel %vm101, %v908, %v910
  %v914 = vsel %vm101, %v910, %v912
  %917 = vrot.lane.b32.xlu0 %v887, 100
  %v918 = vpop.permute.xlu0 %917
  %919 = vrot.lane.b32.xlu0 %v888, 100
  %v920 = vpop.permute.xlu0 %919
  %921 = vrot.lane.b32.xlu0 %v889, 100
  %v922 = vpop.permute.xlu0 %921
  %v923 = vsel %vm112, %v918, %v920
  %v924 = vsel %vm112, %v920, %v922
  %927 = vrot.lane.b32.xlu0 %v887, 99
  %v928 = vpop.permute.xlu0 %927
  %929 = vrot.lane.b32.xlu0 %v888, 99
  %v930 = vpop.permute.xlu0 %929
  %931 = vrot.lane.b32.xlu0 %v889, 99
  %v932 = vpop.permute.xlu0 %931
  %v933 = vsel %vm123, %v928, %v930
  %v934 = vsel %vm123, %v930, %v932
  %937 = vrot.lane.b32.xlu0 %v887, 74
  %v938 = vpop.permute.xlu0 %937
  %939 = vrot.lane.b32.xlu0 %v888, 74
  %v940 = vpop.permute.xlu0 %939
  %941 = vrot.lane.b32.xlu0 %v889, 74
  %v942 = vpop.permute.xlu0 %941
  %v943 = vsel %vm134, %v938, %v940
  %v944 = vsel %vm134, %v940, %v942
  %947 = vrot.lane.b32.xlu0 %v887, 73
  %v948 = vpop.permute.xlu0 %947
  %949 = vrot.lane.b32.xlu0 %v888, 73
  %v950 = vpop.permute.xlu0 %949
  %951 = vrot.lane.b32.xlu0 %v889, 73
  %v952 = vpop.permute.xlu0 %951
  %v953 = vsel %vm145, %v948, %v950
  %v954 = vsel %vm145, %v950, %v952
  %957 = vrot.lane.b32.xlu0 %v887, 72
  %v958 = vpop.permute.xlu0 %957
  %959 = vrot.lane.b32.xlu0 %v888, 72
  %v960 = vpop.permute.xlu0 %959
  %961 = vrot.lane.b32.xlu0 %v889, 72
  %v962 = vpop.permute.xlu0 %961
  %v963 = vsel %vm156, %v958, %v960
  %v964 = vsel %vm156, %v960, %v962
  %v967 = vld [vmem:[%s4] sm:$0xff]
  %v968 = vld [vmem:[%s4 + $0x8] sm:$0xff]
  %v969 = vld [vmem:[%s4 + $0x10] sm:$0xff]
  %v970 = vld [vmem:[%s4 + $0x18] sm:$0xff]
  %v971 = vld [vmem:[%s5] sm:$0xff]
  %v972 = vld [vmem:[%s5 + $0x8] sm:$0xff]
  %v973 = vld [vmem:[%s5 + $0x10] sm:$0xff]
  %v974 = vld [vmem:[%s5 + $0x18] sm:$0xff]
  %976 = vset.pattern.permute.xlu0 0
  %977 = vperm.xlu0 %976, %v971
  %v978 = vpop.permute.xlu0 %977
  %981 = vset.pattern.permute.xlu0 0
  %982 = vperm.xlu0 %981, %v972
  %v983 = vpop.permute.xlu0 %982
  %986 = vset.pattern.permute.xlu0 0
  %987 = vperm.xlu0 %986, %v973
  %v988 = vpop.permute.xlu0 %987
  %991 = vset.pattern.permute.xlu0 0
  %992 = vperm.xlu0 %991, %v974
  %v993 = vpop.permute.xlu0 %992
  %v999 = vunpack.c.l.b16 %v967
  %v1000 = vunpack.c.h.b16 %v967
  %v1001 = vunpack.c.l.b16 %v968
  %v1002 = vunpack.c.h.b16 %v968
  %v1003 = vunpack.c.l.b16 %v969
  %v1004 = vunpack.c.h.b16 %v969
  %v1005 = vunpack.c.l.b16 %v970
  %v1006 = vunpack.c.h.b16 %v970
  %v1007 = vpack.c.b16 %v1001, %v999
  %v1008 = vpack.c.b16 %v1002, %v1000
  %v1009 = vpack.c.b16 %v1005, %v1003
  %v1010 = vpack.c.b16 %v1006, %v1004
  %v1014 = vsel %vm207, %v1008, 0
  %v1017 = vsel %vm207, %v1010, 0
  %1019 = vmatprep.subr.bf16.mxu0 %v888
  %1020 = vmatpush1.bf16.msra.mxu0 %v887
  %1021 = vmatprep.subr.bf16.mxu0 %v895
  %1022 = vmatpush1.bf16.msra.mxu0 %v896
  %1023 = vmatprep.subr.bf16.mxu0 %v902
  %1024 = vmatpush1.bf16.msra.mxu0 %v903
  %1025 = vmatprep.subr.bf16.mxu0 %v914
  %1026 = vmatpush1.bf16.msra.mxu0 %v913
  %1027 = vmatprep.subr.bf16.mxu0 %v924
  %1028 = vmatpush1.bf16.msra.mxu0 %v923
  %1029 = vmatprep.subr.bf16.mxu0 %v934
  %1030 = vmatpush1.bf16.msra.mxu0 %v933
  %1031 = vmatprep.subr.bf16.mxu0 %v944
  %1032 = vmatpush1.bf16.msra.mxu0 %v943
  %1033 = vmatprep.subr.bf16.mxu0 %v954
  %1034 = vmatpush1.bf16.msra.mxu0 %v953
  %1035 = vmatprep.subr.bf16.mxu0 %v964
  %1036 = vmatpush1.bf16.msra.mxu0 %v963
  %1037 = vmatprep.subr.bf16.mxu0 0
  %1038 = vmatpush1.bf16.msra.mxu0 0
  %1039 = vmatprep.subr.bf16.mxu0 0
  %1040 = vmatpush1.bf16.msra.mxu0 0
  %1041 = vmatprep.subr.bf16.mxu0 0
  %1042 = vmatpush1.bf16.msra.mxu0 0
  %1043 = vmatprep.subr.bf16.mxu0 0
  %1044 = vmatpush1.bf16.msra.mxu0 0
  %1045 = vmatprep.subr.bf16.mxu0 0
  %1046 = vmatpush1.bf16.msra.mxu0 0
  %1047 = vmatprep.subr.bf16.mxu0 0
  %1048 = vmatpush1.bf16.msra.mxu0 0
  %1049 = vmatprep.subr.bf16.mxu0 0
  %1050 = vmatpush1.bf16.msra.mxu0 0
  %1051 = vmatprep.mubr.bf16.mxu0 %v1014
  %1052 = vmatmul.mubr.bf16.gmra.mrb[0].mxu0 %v1007
  %v1053 = vpop.f32.mrb[0].mxu0
  %v1054 = vadd.f32 %v978, %v1053
  %v1055 = vpop.f32.mrb[0].mxu0
  %v1056 = vadd.f32 %v978, %v1055
  %v1057 = vpop.f32.mrb[0].mxu0
  %v1058 = vadd.f32 %v983, %v1057
  %v1059 = vpop.f32.mrb[0].mxu0
  %v1060 = vadd.f32 %v983, %v1059
  %1061 = vmatprep.mubr.bf16.mxu0 %v1017
  %1062 = vmatmul.mubr.bf16.gmra.mrb[0].mxu0 %v1009
  %v1063 = vpop.f32.mrb[0].mxu0
  %v1064 = vadd.f32 %v988, %v1063
  %v1065 = vpop.f32.mrb[0].mxu0
  %v1066 = vadd.f32 %v988, %v1065
  %v1067 = vpop.f32.mrb[0].mxu0
  %v1068 = vadd.f32 %v993, %v1067
  %v1069 = vpop.f32.mrb[0].mxu0
  %v1070 = vadd.f32 %v993, %v1069
  %1071 = vdwg.mxu0
  %v1072 = vxor.u32 %v1054, 2147483648
  %v1073 = vxor.u32 %v1056, 2147483648
  %v1074 = vxor.u32 %v1058, 2147483648
  %v1075 = vxor.u32 %v1060, 2147483648
  %v1076 = vxor.u32 %v1064, 2147483648
  %v1077 = vxor.u32 %v1066, 2147483648
  %v1078 = vmul.f32 %v1072, 1.442695
  %v1079 = vpow.pop %v1078
  %v1080 = vmul.f32 %v1073, 1.442695
  %v1081 = vpow.pop %v1080
  %v1082 = vmul.f32 %v1074, 1.442695
  %v1083 = vpow.pop %v1082
  %v1084 = vmul.f32 %v1075, 1.442695
  %v1085 = vpow.pop %v1084
  %v1086 = vmul.f32 %v1076, 1.442695
  %v1087 = vpow.pop %v1086
  %v1088 = vmul.f32 %v1077, 1.442695
  %v1089 = vpow.pop %v1088
  %v1090 = vadd.f32 %v1079, 1.0
  %v1091 = vadd.f32 %v1081, 1.0
  %v1092 = vadd.f32 %v1083, 1.0
  %v1093 = vadd.f32 %v1085, 1.0
  %v1094 = vadd.f32 %v1087, 1.0
  %v1095 = vadd.f32 %v1089, 1.0
  %v1096 = vrcp.pop %v1090
  %v1097 = vmul.f32 1.0, %v1096
  %v1098 = vrcp.pop %v1091
  %v1099 = vmul.f32 1.0, %v1098
  %v1100 = vrcp.pop %v1092
  %v1101 = vmul.f32 1.0, %v1100
  %v1102 = vrcp.pop %v1093
  %v1103 = vmul.f32 1.0, %v1102
  %v1104 = vrcp.pop %v1094
  %v1105 = vmul.f32 1.0, %v1104
  %v1106 = vrcp.pop %v1095
  %v1107 = vmul.f32 1.0, %v1106
  %v1108 = vtanh.pop %v1068
  %v1109 = vtanh.pop %v1070
  %v1110 = vmul.f32 %v1101, %v577
  %v1111 = vmul.f32 %v1103, %v578
  %v1112 = vmul.f32 %v1097, %v1108
  %v1113 = vmul.f32 %v1099, %v1109
  %v1114 = vadd.f32 %v1110, %v1112
  %v1115 = vadd.f32 %v1111, %v1113
  %v1116 = vtanh.pop %v1114
  %v1117 = vtanh.pop %v1115
  %v1118 = vmul.f32 %v1105, %v1116
  %v1119 = vmul.f32 %v1107, %v1117
  %v1120 = vmul.f32 %v1118, %v319
  %v1121 = vmul.f32 %v1119, %v323
  %v1122 = vld [vmem:[%s6] sm:$0xff]
  %v1123 = vld [vmem:[%s7] sm:$0xff]
  %1125 = vset.pattern.permute.xlu0 0
  %1126 = vperm.xlu0 %1125, %v1123
  %v1127 = vpop.permute.xlu0 %1126
  %vm1129 = vcmask 64512
  %v1131 = vsel %vm1129, %v1122, 0
  %1133 = vmatprep.subr.mxu0 %v1121
  %1134 = vmatpush1.msra.mxu0 %v1120
  %1135 = vmatprep.subr.mxu0 0.0
  %1136 = vmatpush1.msra.mxu0 0.0
  %1137 = vmatprep.subr.mxu0 0.0
  %1138 = vmatpush1.msra.mxu0 0.0
  %1139 = vmatprep.subr.mxu0 0.0
  %1140 = vmatpush1.msra.mxu0 0.0
  %1141 = vmatprep.subr.mxu0 0.0
  %1142 = vmatpush1.msra.mxu0 0.0
  %1143 = vmatprep.subr.mxu0 0.0
  %1144 = vmatpush1.msra.mxu0 0.0
  %1145 = vmatprep.subr.mxu0 0.0
  %1146 = vmatpush1.msra.mxu0 0.0
  %1147 = vmatprep.subr.mxu0 0.0
  %1148 = vmatpush1.msra.mxu0 0.0
  %1149 = vmatprep.subr.mxu0 0.0
  %1150 = vmatpush1.msra.mxu0 0.0
  %1151 = vmatprep.subr.mxu0 0.0
  %1152 = vmatpush1.msra.mxu0 0.0
  %1153 = vmatprep.subr.mxu0 0.0
  %1154 = vmatpush1.msra.mxu0 0.0
  %1155 = vmatprep.subr.mxu0 0.0
  %1156 = vmatpush1.msra.mxu0 0.0
  %1157 = vmatprep.subr.mxu0 0.0
  %1158 = vmatpush1.msra.mxu0 0.0
  %1159 = vmatprep.subr.mxu0 0.0
  %1160 = vmatpush1.msra.mxu0 0.0
  %1161 = vmatprep.subr.mxu0 0.0
  %1162 = vmatpush1.msra.mxu0 0.0
  %1163 = vmatprep.subr.mxu0 0.0
  %1164 = vmatpush1.msra.mxu0 0.0
  %1165 = vmatprep.subr.mxu0 0.0
  %1166 = vmatpush1.msra.mxu0 0.0
  %1167 = vmatprep.subr.mxu0 0.0
  %1168 = vmatpush1.msra.mxu0 0.0
  %1169 = vmatprep.subr.mxu0 0.0
  %1170 = vmatpush1.msra.mxu0 0.0
  %1171 = vmatprep.subr.mxu0 0.0
  %1172 = vmatpush1.msra.mxu0 0.0
  %1173 = vmatprep.subr.mxu0 0.0
  %1174 = vmatpush1.msra.mxu0 0.0
  %1175 = vmatprep.subr.mxu0 0.0
  %1176 = vmatpush1.msra.mxu0 0.0
  %1177 = vmatprep.subr.mxu0 0.0
  %1178 = vmatpush1.msra.mxu0 0.0
  %1179 = vmatprep.subr.mxu0 0.0
  %1180 = vmatpush1.msra.mxu0 0.0
  %1181 = vmatprep.subr.mxu0 0.0
  %1182 = vmatpush1.msra.mxu0 0.0
  %1183 = vmatprep.subr.mxu0 0.0
  %1184 = vmatpush1.msra.mxu0 0.0
  %1185 = vmatprep.subr.mxu0 0.0
  %1186 = vmatpush1.msra.mxu0 0.0
  %1187 = vmatprep.subr.mxu0 0.0
  %1188 = vmatpush1.msra.mxu0 0.0
  %1189 = vmatprep.subr.mxu0 0.0
  %1190 = vmatpush1.msra.mxu0 0.0
  %1191 = vmatprep.subr.mxu0 0.0
  %1192 = vmatpush1.msra.mxu0 0.0
  %1193 = vmatprep.subr.mxu0 0.0
  %1194 = vmatpush1.msra.mxu0 0.0
  %1195 = vmatprep.subr.mxu0 0.0
  %1196 = vmatpush1.msra.mxu0 0.0
  %1197 = vmatprep.mubr.f32.mxu0 0.0
  %1198 = vmatmul.mubr.f32.gmra.mrb[0].mxu0 %v1131
  %v1199 = vpop.f32.mrb[0].mxu0
  %v1200 = vadd.f32 %v1127, %v1199
  %v1201 = vpop.f32.mrb[0].mxu0
  %v1202 = vadd.f32 %v1127, %v1201
  %1203 = vdwg.mxu0
  %v1206 = vrot.slane %v1200, 1
  %v1207 = vrot.slane %v1202, 1
  %1208 = vrot.lane.b32.xlu0 %v1206, 115
  %v1209 = vpop.permute.xlu0 %1208
  %1210 = vrot.lane.b32.xlu0 %v1207, 115
  %v1211 = vpop.permute.xlu0 %1210
  %vm1212 = vcmask 941056
  %v1213 = vsel %vm1212, %v1209, %v1211
  %v1217 = vrot.slane %v1200, 2
  %v1218 = vrot.slane %v1202, 2
  %1219 = vrot.lane.b32.xlu0 %v1217, 102
  %v1220 = vpop.permute.xlu0 %1219
  %1221 = vrot.lane.b32.xlu0 %v1218, 102
  %v1222 = vpop.permute.xlu0 %1221
  %vm1223 = vcmask 834560
  %v1224 = vsel %vm1223, %v1220, %v1222
  %v1228 = vrot.slane %v1200, 3
  %v1229 = vrot.slane %v1202, 3
  %1230 = vrot.lane.b32.xlu0 %v1228, 89
  %v1231 = vpop.permute.xlu0 %1230
  %1232 = vrot.lane.b32.xlu0 %v1229, 89
  %v1233 = vpop.permute.xlu0 %1232
  %vm1234 = vcmask 728064
  %v1235 = vsel %vm1234, %v1231, %v1233
  %v1239 = vrot.slane %v1200, 4
  %v1240 = vrot.slane %v1202, 4
  %1241 = vrot.lane.b32.xlu0 %v1239, 76
  %v1242 = vpop.permute.xlu0 %1241
  %1243 = vrot.lane.b32.xlu0 %v1240, 76
  %v1244 = vpop.permute.xlu0 %1243
  %vm1245 = vcmask 621568
  %v1246 = vsel %vm1245, %v1242, %v1244
  %v1250 = vrot.slane %v1200, 5
  %v1251 = vrot.slane %v1202, 5
  %1252 = vrot.lane.b32.xlu0 %v1250, 63
  %v1253 = vpop.permute.xlu0 %1252
  %1254 = vrot.lane.b32.xlu0 %v1251, 63
  %v1255 = vpop.permute.xlu0 %1254
  %vm1256 = vcmask 515072
  %v1257 = vsel %vm1256, %v1253, %v1255
  %v1261 = vrot.slane %v1200, 6
  %v1262 = vrot.slane %v1202, 6
  %1263 = vrot.lane.b32.xlu0 %v1261, 50
  %v1264 = vpop.permute.xlu0 %1263
  %1265 = vrot.lane.b32.xlu0 %v1262, 50
  %v1266 = vpop.permute.xlu0 %1265
  %vm1267 = vcmask 408576
  %v1268 = vsel %vm1267, %v1264, %v1266
  %v1272 = vrot.slane %v1200, 7
  %v1273 = vrot.slane %v1202, 7
  %1274 = vrot.lane.b32.xlu0 %v1272, 37
  %v1275 = vpop.permute.xlu0 %1274
  %1276 = vrot.lane.b32.xlu0 %v1273, 37
  %v1277 = vpop.permute.xlu0 %1276
  %vm1278 = vcmask 302080
  %v1279 = vsel %vm1278, %v1275, %v1277
  %v1282 = vsel %vm1212, %v1202, %v1209
  %v1283 = vsel %vm1223, %v1211, %v1220
  %v1284 = vsel %vm1234, %v1222, %v1231
  %v1285 = vsel %vm1245, %v1233, %v1242
  %v1286 = vsel %vm1256, %v1244, %v1253
  %v1287 = vsel %vm1267, %v1255, %v1264
  %v1288 = vsel %vm1278, %v1266, %v1275
  %v1289 = vld [vmem:[%s8] sm:$0xff]
  %v1290 = vld [vmem:[%s8 + $0x8] sm:$0xff]
  %v1291 = vld [vmem:[%s8 + $0x10] sm:$0xff]
  %v1292 = vld [vmem:[%s8 + $0x18] sm:$0xff]
  %v1293 = vld [vmem:[%s8 + $0x20] sm:$0xff]
  %v1294 = vld [vmem:[%s8 + $0x28] sm:$0xff]
  %v1295 = vld [vmem:[%s8 + $0x30] sm:$0xff]
  %v1296 = vld [vmem:[%s8 + $0x38] sm:$0xff]
  %v1297 = vld [vmem:[%s8 + $0x40] sm:$0xff]
  %v1298 = vld [vmem:[%s8 + $0x48] sm:$0xff]
  %v1299 = vld [vmem:[%s8 + $0x50] sm:$0xff]
  %v1300 = vld [vmem:[%s8 + $0x58] sm:$0xff]
  %v1301 = vld [vmem:[%s8 + $0x60] sm:$0xff]
  %v1302 = vld [vmem:[%s8 + $0x68] sm:$0xff]
  %v1303 = vld [vmem:[%s8 + $0x70] sm:$0xff]
  %v1304 = vld [vmem:[%s8 + $0x78] sm:$0xff]
  %v1305 = vld [vmem:[%s8 + $0x80] sm:$0xff]
  %v1306 = vld [vmem:[%s8 + $0x88] sm:$0xff]
  %v1307 = vld [vmem:[%s8 + $0x90] sm:$0xff]
  %v1308 = vld [vmem:[%s8 + $0x98] sm:$0xff]
  %v1309 = vld [vmem:[%s8 + $0xa0] sm:$0xff]
  %v1310 = vld [vmem:[%s8 + $0xa8] sm:$0xff]
  %v1311 = vld [vmem:[%s8 + $0xb0] sm:$0xff]
  %v1312 = vld [vmem:[%s8 + $0xb8] sm:$0xff]
  %v1313 = vld [vmem:[%s8 + $0xc0] sm:$0xff]
  %v1314 = vld [vmem:[%s8 + $0xc8] sm:$0xff]
  %v1315 = vld [vmem:[%s8 + $0xd0] sm:$0xff]
  %v1316 = vld [vmem:[%s8 + $0xd8] sm:$0xff]
  %v1317 = vld [vmem:[%s8 + $0xe0] sm:$0xff]
  %v1318 = vld [vmem:[%s8 + $0xe8] sm:$0xff]
  %v1319 = vld [vmem:[%s8 + $0xf0] sm:$0xff]
  %v1320 = vld [vmem:[%s8 + $0xf8] sm:$0xff]
  %v1321 = vld [vmem:[%s8 + $0x100] sm:$0xff]
  %v1322 = vld [vmem:[%s8 + $0x108] sm:$0xff]
  %v1323 = vld [vmem:[%s8 + $0x110] sm:$0xff]
  %v1324 = vld [vmem:[%s8 + $0x118] sm:$0xff]
  %v1325 = vld [vmem:[%s8 + $0x120] sm:$0xff]
  %v1326 = vld [vmem:[%s8 + $0x128] sm:$0xff]
  %v1327 = vld [vmem:[%s8 + $0x130] sm:$0xff]
  %v1328 = vld [vmem:[%s8 + $0x138] sm:$0xff]
  %v1329 = vld [vmem:[%s8 + $0x140] sm:$0xff]
  %v1330 = vld [vmem:[%s8 + $0x148] sm:$0xff]
  %v1331 = vld [vmem:[%s8 + $0x150] sm:$0xff]
  %v1332 = vld [vmem:[%s8 + $0x158] sm:$0xff]
  %v1333 = vld [vmem:[%s8 + $0x160] sm:$0xff]
  %v1334 = vld [vmem:[%s8 + $0x168] sm:$0xff]
  %v1335 = vld [vmem:[%s8 + $0x170] sm:$0xff]
  %v1336 = vld [vmem:[%s8 + $0x178] sm:$0xff]
  %v1337 = vld [vmem:[%s8 + $0x180] sm:$0xff]
  %v1338 = vld [vmem:[%s8 + $0x188] sm:$0xff]
  %v1339 = vld [vmem:[%s8 + $0x190] sm:$0xff]
  %v1340 = vld [vmem:[%s8 + $0x198] sm:$0xff]
  %v1341 = vld [vmem:[%s8 + $0x1a0] sm:$0xff]
  %v1342 = vld [vmem:[%s8 + $0x1a8] sm:$0xff]
  %v1343 = vld [vmem:[%s8 + $0x1b0] sm:$0xff]
  %v1344 = vld [vmem:[%s8 + $0x1b8] sm:$0xff]
  %v1345 = vld [vmem:[%s8 + $0x1c0] sm:$0xff]
  %v1346 = vld [vmem:[%s8 + $0x1c8] sm:$0xff]
  %v1347 = vld [vmem:[%s8 + $0x1d0] sm:$0xff]
  %v1348 = vld [vmem:[%s8 + $0x1d8] sm:$0xff]
  %v1349 = vld [vmem:[%s8 + $0x1e0] sm:$0xff]
  %v1350 = vld [vmem:[%s8 + $0x1e8] sm:$0xff]
  %v1351 = vld [vmem:[%s8 + $0x1f0] sm:$0xff]
  %v1352 = vld [vmem:[%s8 + $0x1f8] sm:$0xff]
  %v1353 = vld [vmem:[%s8 + $0x200] sm:$0xff]
  %v1354 = vld [vmem:[%s8 + $0x208] sm:$0xff]
  %v1355 = vld [vmem:[%s8 + $0x210] sm:$0xff]
  %v1356 = vld [vmem:[%s8 + $0x218] sm:$0xff]
  %v1357 = vld [vmem:[%s8 + $0x220] sm:$0xff]
  %v1358 = vld [vmem:[%s8 + $0x228] sm:$0xff]
  %v1359 = vld [vmem:[%s8 + $0x230] sm:$0xff]
  %v1360 = vld [vmem:[%s8 + $0x238] sm:$0xff]
  %v1361 = vld [vmem:[%s8 + $0x240] sm:$0xff]
  %v1362 = vld [vmem:[%s8 + $0x248] sm:$0xff]
  %v1363 = vld [vmem:[%s8 + $0x250] sm:$0xff]
  %v1364 = vld [vmem:[%s8 + $0x258] sm:$0xff]
  %v1365 = vld [vmem:[%s8 + $0x260] sm:$0xff]
  %v1366 = vld [vmem:[%s8 + $0x268] sm:$0xff]
  %v1367 = vld [vmem:[%s8 + $0x270] sm:$0xff]
  %v1368 = vld [vmem:[%s8 + $0x278] sm:$0xff]
  %v1369 = vld [vmem:[%s8 + $0x280] sm:$0xff]
  %v1370 = vld [vmem:[%s8 + $0x288] sm:$0xff]
  %v1371 = vld [vmem:[%s8 + $0x290] sm:$0xff]
  %v1372 = vld [vmem:[%s8 + $0x298] sm:$0xff]
  %v1373 = vld [vmem:[%s8 + $0x2a0] sm:$0xff]
  %v1374 = vld [vmem:[%s8 + $0x2a8] sm:$0xff]
  %v1375 = vld [vmem:[%s8 + $0x2b0] sm:$0xff]
  %v1376 = vld [vmem:[%s8 + $0x2b8] sm:$0xff]
  %v1377 = vld [vmem:[%s8 + $0x2c0] sm:$0xff]
  %v1378 = vld [vmem:[%s8 + $0x2c8] sm:$0xff]
  %v1379 = vld [vmem:[%s8 + $0x2d0] sm:$0xff]
  %v1380 = vld [vmem:[%s8 + $0x2d8] sm:$0xff]
  %v1381 = vld [vmem:[%s8 + $0x2e0] sm:$0xff]
  %v1382 = vld [vmem:[%s8 + $0x2e8] sm:$0xff]
  %v1383 = vld [vmem:[%s8 + $0x2f0] sm:$0xff]
  %v1384 = vld [vmem:[%s8 + $0x2f8] sm:$0xff]
  %v1385 = vld [vmem:[%s8 + $0x300] sm:$0xff]
  %v1386 = vld [vmem:[%s8 + $0x308] sm:$0xff]
  %v1387 = vld [vmem:[%s8 + $0x310] sm:$0xff]
  %v1388 = vld [vmem:[%s8 + $0x318] sm:$0xff]
  %v1389 = vld [vmem:[%s8 + $0x320] sm:$0xff]
  %v1390 = vld [vmem:[%s8 + $0x328] sm:$0xff]
  %v1391 = vld [vmem:[%s8 + $0x330] sm:$0xff]
  %v1392 = vld [vmem:[%s8 + $0x338] sm:$0xff]
  %v1393 = vld [vmem:[%s8 + $0x340] sm:$0xff]
  %v1394 = vld [vmem:[%s8 + $0x348] sm:$0xff]
  %v1395 = vld [vmem:[%s8 + $0x350] sm:$0xff]
  %v1396 = vld [vmem:[%s8 + $0x358] sm:$0xff]
  %v1397 = vld [vmem:[%s8 + $0x360] sm:$0xff]
  %v1398 = vld [vmem:[%s8 + $0x368] sm:$0xff]
  %v1399 = vld [vmem:[%s8 + $0x370] sm:$0xff]
  %v1400 = vld [vmem:[%s8 + $0x378] sm:$0xff]
  %v1401 = vld [vmem:[%s8 + $0x380] sm:$0xff]
  %v1402 = vld [vmem:[%s8 + $0x388] sm:$0xff]
  %v1403 = vld [vmem:[%s8 + $0x390] sm:$0xff]
  %v1404 = vld [vmem:[%s8 + $0x398] sm:$0xff]
  %v1405 = vld [vmem:[%s8 + $0x3a0] sm:$0xff]
  %v1406 = vld [vmem:[%s8 + $0x3a8] sm:$0xff]
  %v1407 = vld [vmem:[%s8 + $0x3b0] sm:$0xff]
  %v1408 = vld [vmem:[%s8 + $0x3b8] sm:$0xff]
  %v1409 = vld [vmem:[%s8 + $0x3c0] sm:$0xff]
  %v1410 = vld [vmem:[%s8 + $0x3c8] sm:$0xff]
  %v1411 = vld [vmem:[%s8 + $0x3d0] sm:$0xff]
  %v1412 = vld [vmem:[%s8 + $0x3d8] sm:$0xff]
  %v1413 = vld [vmem:[%s8 + $0x3e0] sm:$0xff]
  %v1414 = vld [vmem:[%s8 + $0x3e8] sm:$0xff]
  %v1415 = vld [vmem:[%s8 + $0x3f0] sm:$0xff]
  %v1416 = vld [vmem:[%s8 + $0x3f8] sm:$0xff]
  %v1417 = vld [vmem:[%s8 + $0x400] sm:$0xff]
  %v1418 = vld [vmem:[%s8 + $0x408] sm:$0xff]
  %v1419 = vld [vmem:[%s8 + $0x410] sm:$0xff]
  %v1420 = vld [vmem:[%s8 + $0x418] sm:$0xff]
  %v1421 = vld [vmem:[%s8 + $0x420] sm:$0xff]
  %v1422 = vld [vmem:[%s8 + $0x428] sm:$0xff]
  %v1423 = vld [vmem:[%s8 + $0x430] sm:$0xff]
  %v1424 = vld [vmem:[%s8 + $0x438] sm:$0xff]
  %v1425 = vld [vmem:[%s8 + $0x440] sm:$0xff]
  %v1426 = vld [vmem:[%s8 + $0x448] sm:$0xff]
  %v1427 = vld [vmem:[%s8 + $0x450] sm:$0xff]
  %v1428 = vld [vmem:[%s8 + $0x458] sm:$0xff]
  %v1429 = vld [vmem:[%s8 + $0x460] sm:$0xff]
  %v1430 = vld [vmem:[%s8 + $0x468] sm:$0xff]
  %v1431 = vld [vmem:[%s8 + $0x470] sm:$0xff]
  %v1432 = vld [vmem:[%s8 + $0x478] sm:$0xff]
  %v1433 = vld [vmem:[%s8 + $0x480] sm:$0xff]
  %v1434 = vld [vmem:[%s8 + $0x488] sm:$0xff]
  %v1435 = vld [vmem:[%s8 + $0x490] sm:$0xff]
  %v1436 = vld [vmem:[%s8 + $0x498] sm:$0xff]
  %v1437 = vld [vmem:[%s8 + $0x4a0] sm:$0xff]
  %v1438 = vld [vmem:[%s8 + $0x4a8] sm:$0xff]
  %v1439 = vld [vmem:[%s8 + $0x4b0] sm:$0xff]
  %v1440 = vld [vmem:[%s8 + $0x4b8] sm:$0xff]
  %v1441 = vld [vmem:[%s8 + $0x4c0] sm:$0xff]
  %v1442 = vld [vmem:[%s8 + $0x4c8] sm:$0xff]
  %v1443 = vld [vmem:[%s8 + $0x4d0] sm:$0xff]
  %v1444 = vld [vmem:[%s8 + $0x4d8] sm:$0xff]
  %v1445 = vld [vmem:[%s8 + $0x4e0] sm:$0xff]
  %v1446 = vld [vmem:[%s8 + $0x4e8] sm:$0xff]
  %v1447 = vld [vmem:[%s8 + $0x4f0] sm:$0xff]
  %v1448 = vld [vmem:[%s8 + $0x4f8] sm:$0xff]
  %v1449 = vld [vmem:[%s8 + $0x500] sm:$0xff]
  %v1450 = vld [vmem:[%s8 + $0x508] sm:$0xff]
  %v1451 = vld [vmem:[%s8 + $0x510] sm:$0xff]
  %v1452 = vld [vmem:[%s8 + $0x518] sm:$0xff]
  %v1453 = vld [vmem:[%s8 + $0x520] sm:$0xff]
  %v1454 = vld [vmem:[%s8 + $0x528] sm:$0xff]
  %v1455 = vld [vmem:[%s8 + $0x530] sm:$0xff]
  %v1456 = vld [vmem:[%s8 + $0x538] sm:$0xff]
  %v1457 = vld [vmem:[%s8 + $0x540] sm:$0xff]
  %v1458 = vld [vmem:[%s8 + $0x548] sm:$0xff]
  %v1459 = vld [vmem:[%s8 + $0x550] sm:$0xff]
  %v1460 = vld [vmem:[%s8 + $0x558] sm:$0xff]
  %v1461 = vld [vmem:[%s8 + $0x560] sm:$0xff]
  %v1462 = vld [vmem:[%s8 + $0x568] sm:$0xff]
  %v1463 = vld [vmem:[%s8 + $0x570] sm:$0xff]
  %v1464 = vld [vmem:[%s8 + $0x578] sm:$0xff]
  %v1465 = vld [vmem:[%s8 + $0x580] sm:$0xff]
  %v1466 = vld [vmem:[%s8 + $0x588] sm:$0xff]
  %v1467 = vld [vmem:[%s8 + $0x590] sm:$0xff]
  %v1468 = vld [vmem:[%s8 + $0x598] sm:$0xff]
  %v1469 = vld [vmem:[%s8 + $0x5a0] sm:$0xff]
  %v1470 = vld [vmem:[%s8 + $0x5a8] sm:$0xff]
  %v1471 = vld [vmem:[%s8 + $0x5b0] sm:$0xff]
  %v1472 = vld [vmem:[%s8 + $0x5b8] sm:$0xff]
  %v1473 = vld [vmem:[%s8 + $0x5c0] sm:$0xff]
  %v1474 = vld [vmem:[%s8 + $0x5c8] sm:$0xff]
  %v1475 = vld [vmem:[%s8 + $0x5d0] sm:$0xff]
  %v1476 = vld [vmem:[%s8 + $0x5d8] sm:$0xff]
  %v1477 = vld [vmem:[%s8 + $0x5e0] sm:$0xff]
  %v1478 = vld [vmem:[%s8 + $0x5e8] sm:$0xff]
  %v1479 = vld [vmem:[%s8 + $0x5f0] sm:$0xff]
  %v1480 = vld [vmem:[%s8 + $0x5f8] sm:$0xff]
  %v1481 = vld [vmem:[%s8 + $0x600] sm:$0xff]
  %v1482 = vld [vmem:[%s8 + $0x608] sm:$0xff]
  %v1483 = vld [vmem:[%s8 + $0x610] sm:$0xff]
  %v1484 = vld [vmem:[%s8 + $0x618] sm:$0xff]
  %v1485 = vld [vmem:[%s8 + $0x620] sm:$0xff]
  %v1486 = vld [vmem:[%s8 + $0x628] sm:$0xff]
  %v1487 = vld [vmem:[%s8 + $0x630] sm:$0xff]
  %v1488 = vld [vmem:[%s8 + $0x638] sm:$0xff]
  %v1489 = vld [vmem:[%s8 + $0x640] sm:$0xff]
  %v1490 = vld [vmem:[%s8 + $0x648] sm:$0xff]
  %v1491 = vld [vmem:[%s8 + $0x650] sm:$0xff]
  %v1492 = vld [vmem:[%s8 + $0x658] sm:$0xff]
  %v1493 = vld [vmem:[%s8 + $0x660] sm:$0xff]
  %v1494 = vld [vmem:[%s8 + $0x668] sm:$0xff]
  %v1495 = vld [vmem:[%s8 + $0x670] sm:$0xff]
  %v1496 = vld [vmem:[%s8 + $0x678] sm:$0xff]
  %v1497 = vld [vmem:[%s8 + $0x680] sm:$0xff]
  %v1498 = vld [vmem:[%s8 + $0x688] sm:$0xff]
  %v1499 = vld [vmem:[%s8 + $0x690] sm:$0xff]
  %v1500 = vld [vmem:[%s8 + $0x698] sm:$0xff]
  %v1501 = vld [vmem:[%s8 + $0x6a0] sm:$0xff]
  %v1502 = vld [vmem:[%s8 + $0x6a8] sm:$0xff]
  %v1503 = vld [vmem:[%s8 + $0x6b0] sm:$0xff]
  %v1504 = vld [vmem:[%s8 + $0x6b8] sm:$0xff]
  %v1505 = vld [vmem:[%s8 + $0x6c0] sm:$0xff]
  %v1506 = vld [vmem:[%s8 + $0x6c8] sm:$0xff]
  %v1507 = vld [vmem:[%s8 + $0x6d0] sm:$0xff]
  %v1508 = vld [vmem:[%s8 + $0x6d8] sm:$0xff]
  %v1509 = vld [vmem:[%s8 + $0x6e0] sm:$0xff]
  %v1510 = vld [vmem:[%s8 + $0x6e8] sm:$0xff]
  %v1511 = vld [vmem:[%s8 + $0x6f0] sm:$0xff]
  %v1512 = vld [vmem:[%s8 + $0x6f8] sm:$0xff]
  %v1513 = vld [vmem:[%s8 + $0x700] sm:$0xff]
  %v1514 = vld [vmem:[%s8 + $0x708] sm:$0xff]
  %v1515 = vld [vmem:[%s8 + $0x710] sm:$0xff]
  %v1516 = vld [vmem:[%s8 + $0x718] sm:$0xff]
  %v1517 = vld [vmem:[%s8 + $0x720] sm:$0xff]
  %v1518 = vld [vmem:[%s8 + $0x728] sm:$0xff]
  %v1519 = vld [vmem:[%s8 + $0x730] sm:$0xff]
  %v1520 = vld [vmem:[%s8 + $0x738] sm:$0xff]
  %v1521 = vld [vmem:[%s8 + $0x740] sm:$0xff]
  %v1522 = vld [vmem:[%s8 + $0x748] sm:$0xff]
  %v1523 = vld [vmem:[%s8 + $0x750] sm:$0xff]
  %v1524 = vld [vmem:[%s8 + $0x758] sm:$0xff]
  %v1525 = vld [vmem:[%s8 + $0x760] sm:$0xff]
  %v1526 = vld [vmem:[%s8 + $0x768] sm:$0xff]
  %v1527 = vld [vmem:[%s8 + $0x770] sm:$0xff]
  %v1528 = vld [vmem:[%s8 + $0x778] sm:$0xff]
  %v1529 = vld [vmem:[%s8 + $0x780] sm:$0xff]
  %v1530 = vld [vmem:[%s8 + $0x788] sm:$0xff]
  %v1531 = vld [vmem:[%s8 + $0x790] sm:$0xff]
  %v1532 = vld [vmem:[%s9] sm:$0x1]
  %vm1533 = vcmask 195584
  %v1534 = vsel %vm1533, %v1277, 0
  %1536 = vmatprep.subr.mxu0 0.0
  %1537 = vmatpush1.msra.mxu0 %v1289
  %1538 = vmatprep.subr.mxu0 0.0
  %1539 = vmatpush1.msra.mxu0 %v1290
  %1540 = vmatprep.subr.mxu0 0.0
  %1541 = vmatpush1.msra.mxu0 %v1291
  %1542 = vmatprep.subr.mxu0 0.0
  %1543 = vmatpush1.msra.mxu0 %v1292
  %1544 = vmatprep.subr.mxu0 0.0
  %1545 = vmatpush1.msra.mxu0 %v1293
  %1546 = vmatprep.subr.mxu0 0.0
  %1547 = vmatpush1.msra.mxu0 %v1294
  %1548 = vmatprep.subr.mxu0 0.0
  %1549 = vmatpush1.msra.mxu0 %v1295
  %1550 = vmatprep.subr.mxu0 0.0
  %1551 = vmatpush1.msra.mxu0 %v1296
  %1552 = vmatprep.subr.mxu0 0.0
  %1553 = vmatpush1.msra.mxu0 %v1297
  %1554 = vmatprep.subr.mxu0 0.0
  %1555 = vmatpush1.msra.mxu0 %v1298
  %1556 = vmatprep.subr.mxu0 0.0
  %1557 = vmatpush1.msra.mxu0 %v1299
  %1558 = vmatprep.subr.mxu0 0.0
  %1559 = vmatpush1.msra.mxu0 %v1300
  %1560 = vmatprep.subr.mxu0 0.0
  %1561 = vmatpush1.msra.mxu0 %v1301
  %1562 = vmatprep.subr.mxu0 0.0
  %1563 = vmatpush1.msra.mxu0 %v1302
  %1564 = vmatprep.subr.mxu0 0.0
  %1565 = vmatpush1.msra.mxu0 %v1303
  %1566 = vmatprep.subr.mxu0 0.0
  %1567 = vmatpush1.msra.mxu0 %v1304
  %1568 = vmatprep.subr.mxu0 0.0
  %1569 = vmatpush1.msra.mxu0 %v1305
  %1570 = vmatprep.subr.mxu0 0.0
  %1571 = vmatpush1.msra.mxu0 %v1306
  %1572 = vmatprep.subr.mxu0 0.0
  %1573 = vmatpush1.msra.mxu0 %v1307
  %1574 = vmatprep.subr.mxu0 0.0
  %1575 = vmatpush1.msra.mxu0 %v1308
  %1576 = vmatprep.subr.mxu0 0.0
  %1577 = vmatpush1.msra.mxu0 %v1309
  %1578 = vmatprep.subr.mxu0 0.0
  %1579 = vmatpush1.msra.mxu0 %v1310
  %1580 = vmatprep.subr.mxu0 0.0
  %1581 = vmatpush1.msra.mxu0 %v1311
  %1582 = vmatprep.subr.mxu0 0.0
  %1583 = vmatpush1.msra.mxu0 %v1312
  %1584 = vmatprep.subr.mxu0 0.0
  %1585 = vmatpush1.msra.mxu0 %v1313
  %1586 = vmatprep.subr.mxu0 0.0
  %1587 = vmatpush1.msra.mxu0 %v1314
  %1588 = vmatprep.subr.mxu0 0.0
  %1589 = vmatpush1.msra.mxu0 %v1315
  %1590 = vmatprep.subr.mxu0 0.0
  %1591 = vmatpush1.msra.mxu0 %v1316
  %1592 = vmatprep.subr.mxu0 0.0
  %1593 = vmatpush1.msra.mxu0 %v1317
  %1594 = vmatprep.subr.mxu0 0.0
  %1595 = vmatpush1.msra.mxu0 %v1318
  %1596 = vmatprep.subr.mxu0 0.0
  %1597 = vmatpush1.msra.mxu0 %v1319
  %1598 = vmatprep.subr.mxu0 0.0
  %1599 = vmatpush1.msra.mxu0 %v1320
  %1600 = vmatprep.mubr.f32.mxu0 %v1282
  %1601 = vmatmul.mubr.f32.gmra.mrb[0].mxu0 %v1200
  %v1602 = vpop.f32.mrb[0].mxu0
  %v1603 = vadd.f32 %v1532, %v1602
  %v1604 = vpop.f32.mrb[0].mxu0
  %1605 = vdwg.mxu0
  %1606 = vmatprep.subr.mxu0 0.0
  %1607 = vmatpush1.msra.mxu0 %v1321
  %1608 = vmatprep.subr.mxu0 0.0
  %1609 = vmatpush1.msra.mxu0 %v1322
  %1610 = vmatprep.subr.mxu0 0.0
  %1611 = vmatpush1.msra.mxu0 %v1323
  %1612 = vmatprep.subr.mxu0 0.0
  %1613 = vmatpush1.msra.mxu0 %v1324
  %1614 = vmatprep.subr.mxu0 0.0
  %1615 = vmatpush1.msra.mxu0 %v1325
  %1616 = vmatprep.subr.mxu0 0.0
  %1617 = vmatpush1.msra.mxu0 %v1326
  %1618 = vmatprep.subr.mxu0 0.0
  %1619 = vmatpush1.msra.mxu0 %v1327
  %1620 = vmatprep.subr.mxu0 0.0
  %1621 = vmatpush1.msra.mxu0 %v1328
  %1622 = vmatprep.subr.mxu0 0.0
  %1623 = vmatpush1.msra.mxu0 %v1329
  %1624 = vmatprep.subr.mxu0 0.0
  %1625 = vmatpush1.msra.mxu0 %v1330
  %1626 = vmatprep.subr.mxu0 0.0
  %1627 = vmatpush1.msra.mxu0 %v1331
  %1628 = vmatprep.subr.mxu0 0.0
  %1629 = vmatpush1.msra.mxu0 %v1332
  %1630 = vmatprep.subr.mxu0 0.0
  %1631 = vmatpush1.msra.mxu0 %v1333
  %1632 = vmatprep.subr.mxu0 0.0
  %1633 = vmatpush1.msra.mxu0 %v1334
  %1634 = vmatprep.subr.mxu0 0.0
  %1635 = vmatpush1.msra.mxu0 %v1335
  %1636 = vmatprep.subr.mxu0 0.0
  %1637 = vmatpush1.msra.mxu0 %v1336
  %1638 = vmatprep.subr.mxu0 0.0
  %1639 = vmatpush1.msra.mxu0 %v1337
  %1640 = vmatprep.subr.mxu0 0.0
  %1641 = vmatpush1.msra.mxu0 %v1338
  %1642 = vmatprep.subr.mxu0 0.0
  %1643 = vmatpush1.msra.mxu0 %v1339
  %1644 = vmatprep.subr.mxu0 0.0
  %1645 = vmatpush1.msra.mxu0 %v1340
  %1646 = vmatprep.subr.mxu0 0.0
  %1647 = vmatpush1.msra.mxu0 %v1341
  %1648 = vmatprep.subr.mxu0 0.0
  %1649 = vmatpush1.msra.mxu0 %v1342
  %1650 = vmatprep.subr.mxu0 0.0
  %1651 = vmatpush1.msra.mxu0 %v1343
  %1652 = vmatprep.subr.mxu0 0.0
  %1653 = vmatpush1.msra.mxu0 %v1344
  %1654 = vmatprep.subr.mxu0 0.0
  %1655 = vmatpush1.msra.mxu0 %v1345
  %1656 = vmatprep.subr.mxu0 0.0
  %1657 = vmatpush1.msra.mxu0 %v1346
  %1658 = vmatprep.subr.mxu0 0.0
  %1659 = vmatpush1.msra.mxu0 %v1347
  %1660 = vmatprep.subr.mxu0 0.0
  %1661 = vmatpush1.msra.mxu0 %v1348
  %1662 = vmatprep.subr.mxu0 0.0
  %1663 = vmatpush1.msra.mxu0 %v1349
  %1664 = vmatprep.subr.mxu0 0.0
  %1665 = vmatpush1.msra.mxu0 %v1350
  %1666 = vmatprep.subr.mxu0 0.0
  %1667 = vmatpush1.msra.mxu0 %v1351
  %1668 = vmatprep.subr.mxu0 0.0
  %1669 = vmatpush1.msra.mxu0 %v1352
  %1670 = vmatprep.mubr.f32.mxu0 %v1283
  %1671 = vmatmul.mubr.f32.gmra.mrb[0].mxu0 %v1213
  %v1672 = vpop.f32.mrb[0].mxu0
  %v1673 = vadd.f32 %v1603, %v1672
  %v1674 = vpop.f32.mrb[0].mxu0
  %1675 = vdwg.mxu0
  %1676 = vmatprep.subr.mxu0 0.0
  %1677 = vmatpush1.msra.mxu0 %v1353
  %1678 = vmatprep.subr.mxu0 0.0
  %1679 = vmatpush1.msra.mxu0 %v1354
  %1680 = vmatprep.subr.mxu0 0.0
  %1681 = vmatpush1.msra.mxu0 %v1355
  %1682 = vmatprep.subr.mxu0 0.0
  %1683 = vmatpush1.msra.mxu0 %v1356
  %1684 = vmatprep.subr.mxu0 0.0
  %1685 = vmatpush1.msra.mxu0 %v1357
  %1686 = vmatprep.subr.mxu0 0.0
  %1687 = vmatpush1.msra.mxu0 %v1358
  %1688 = vmatprep.subr.mxu0 0.0
  %1689 = vmatpush1.msra.mxu0 %v1359
  %1690 = vmatprep.subr.mxu0 0.0
  %1691 = vmatpush1.msra.mxu0 %v1360
  %1692 = vmatprep.subr.mxu0 0.0
  %1693 = vmatpush1.msra.mxu0 %v1361
  %1694 = vmatprep.subr.mxu0 0.0
  %1695 = vmatpush1.msra.mxu0 %v1362
  %1696 = vmatprep.subr.mxu0 0.0
  %1697 = vmatpush1.msra.mxu0 %v1363
  %1698 = vmatprep.subr.mxu0 0.0
  %1699 = vmatpush1.msra.mxu0 %v1364
  %1700 = vmatprep.subr.mxu0 0.0
  %1701 = vmatpush1.msra.mxu0 %v1365
  %1702 = vmatprep.subr.mxu0 0.0
  %1703 = vmatpush1.msra.mxu0 %v1366
  %1704 = vmatprep.subr.mxu0 0.0
  %1705 = vmatpush1.msra.mxu0 %v1367
  %1706 = vmatprep.subr.mxu0 0.0
  %1707 = vmatpush1.msra.mxu0 %v1368
  %1708 = vmatprep.subr.mxu0 0.0
  %1709 = vmatpush1.msra.mxu0 %v1369
  %1710 = vmatprep.subr.mxu0 0.0
  %1711 = vmatpush1.msra.mxu0 %v1370
  %1712 = vmatprep.subr.mxu0 0.0
  %1713 = vmatpush1.msra.mxu0 %v1371
  %1714 = vmatprep.subr.mxu0 0.0
  %1715 = vmatpush1.msra.mxu0 %v1372
  %1716 = vmatprep.subr.mxu0 0.0
  %1717 = vmatpush1.msra.mxu0 %v1373
  %1718 = vmatprep.subr.mxu0 0.0
  %1719 = vmatpush1.msra.mxu0 %v1374
  %1720 = vmatprep.subr.mxu0 0.0
  %1721 = vmatpush1.msra.mxu0 %v1375
  %1722 = vmatprep.subr.mxu0 0.0
  %1723 = vmatpush1.msra.mxu0 %v1376
  %1724 = vmatprep.subr.mxu0 0.0
  %1725 = vmatpush1.msra.mxu0 %v1377
  %1726 = vmatprep.subr.mxu0 0.0
  %1727 = vmatpush1.msra.mxu0 %v1378
  %1728 = vmatprep.subr.mxu0 0.0
  %1729 = vmatpush1.msra.mxu0 %v1379
  %1730 = vmatprep.subr.mxu0 0.0
  %1731 = vmatpush1.msra.mxu0 %v1380
  %1732 = vmatprep.subr.mxu0 0.0
  %1733 = vmatpush1.msra.mxu0 %v1381
  %1734 = vmatprep.subr.mxu0 0.0
  %1735 = vmatpush1.msra.mxu0 %v1382
  %1736 = vmatprep.subr.mxu0 0.0
  %1737 = vmatpush1.msra.mxu0 %v1383
  %1738 = vmatprep.subr.mxu0 0.0
  %1739 = vmatpush1.msra.mxu0 %v1384
  %1740 = vmatprep.mubr.f32.mxu0 %v1284
  %1741 = vmatmul.mubr.f32.gmra.mrb[0].mxu0 %v1224
  %v1742 = vpop.f32.mrb[0].mxu0
  %v1743 = vadd.f32 %v1673, %v1742
  %v1744 = vpop.f32.mrb[0].mxu0
  %1745 = vdwg.mxu0
  %1746 = vmatprep.subr.mxu0 0.0
  %1747 = vmatpush1.msra.mxu0 %v1385
  %1748 = vmatprep.subr.mxu0 0.0
  %1749 = vmatpush1.msra.mxu0 %v1386
  %1750 = vmatprep.subr.mxu0 0.0
  %1751 = vmatpush1.msra.mxu0 %v1387
  %1752 = vmatprep.subr.mxu0 0.0
  %1753 = vmatpush1.msra.mxu0 %v1388
  %1754 = vmatprep.subr.mxu0 0.0
  %1755 = vmatpush1.msra.mxu0 %v1389
  %1756 = vmatprep.subr.mxu0 0.0
  %1757 = vmatpush1.msra.mxu0 %v1390
  %1758 = vmatprep.subr.mxu0 0.0
  %1759 = vmatpush1.msra.mxu0 %v1391
  %1760 = vmatprep.subr.mxu0 0.0
  %1761 = vmatpush1.msra.mxu0 %v1392
  %1762 = vmatprep.subr.mxu0 0.0
  %1763 = vmatpush1.msra.mxu0 %v1393
  %1764 = vmatprep.subr.mxu0 0.0
  %1765 = vmatpush1.msra.mxu0 %v1394
  %1766 = vmatprep.subr.mxu0 0.0
  %1767 = vmatpush1.msra.mxu0 %v1395
  %1768 = vmatprep.subr.mxu0 0.0
  %1769 = vmatpush1.msra.mxu0 %v1396
  %1770 = vmatprep.subr.mxu0 0.0
  %1771 = vmatpush1.msra.mxu0 %v1397
  %1772 = vmatprep.subr.mxu0 0.0
  %1773 = vmatpush1.msra.mxu0 %v1398
  %1774 = vmatprep.subr.mxu0 0.0
  %1775 = vmatpush1.msra.mxu0 %v1399
  %1776 = vmatprep.subr.mxu0 0.0
  %1777 = vmatpush1.msra.mxu0 %v1400
  %1778 = vmatprep.subr.mxu0 0.0
  %1779 = vmatpush1.msra.mxu0 %v1401
  %1780 = vmatprep.subr.mxu0 0.0
  %1781 = vmatpush1.msra.mxu0 %v1402
  %1782 = vmatprep.subr.mxu0 0.0
  %1783 = vmatpush1.msra.mxu0 %v1403
  %1784 = vmatprep.subr.mxu0 0.0
  %1785 = vmatpush1.msra.mxu0 %v1404
  %1786 = vmatprep.subr.mxu0 0.0
  %1787 = vmatpush1.msra.mxu0 %v1405
  %1788 = vmatprep.subr.mxu0 0.0
  %1789 = vmatpush1.msra.mxu0 %v1406
  %1790 = vmatprep.subr.mxu0 0.0
  %1791 = vmatpush1.msra.mxu0 %v1407
  %1792 = vmatprep.subr.mxu0 0.0
  %1793 = vmatpush1.msra.mxu0 %v1408
  %1794 = vmatprep.subr.mxu0 0.0
  %1795 = vmatpush1.msra.mxu0 %v1409
  %1796 = vmatprep.subr.mxu0 0.0
  %1797 = vmatpush1.msra.mxu0 %v1410
  %1798 = vmatprep.subr.mxu0 0.0
  %1799 = vmatpush1.msra.mxu0 %v1411
  %1800 = vmatprep.subr.mxu0 0.0
  %1801 = vmatpush1.msra.mxu0 %v1412
  %1802 = vmatprep.subr.mxu0 0.0
  %1803 = vmatpush1.msra.mxu0 %v1413
  %1804 = vmatprep.subr.mxu0 0.0
  %1805 = vmatpush1.msra.mxu0 %v1414
  %1806 = vmatprep.subr.mxu0 0.0
  %1807 = vmatpush1.msra.mxu0 %v1415
  %1808 = vmatprep.subr.mxu0 0.0
  %1809 = vmatpush1.msra.mxu0 %v1416
  %1810 = vmatprep.mubr.f32.mxu0 %v1285
  %1811 = vmatmul.mubr.f32.gmra.mrb[0].mxu0 %v1235
  %v1812 = vpop.f32.mrb[0].mxu0
  %v1813 = vadd.f32 %v1743, %v1812
  %v1814 = vpop.f32.mrb[0].mxu0
  %1815 = vdwg.mxu0
  %1816 = vmatprep.subr.mxu0 0.0
  %1817 = vmatpush1.msra.mxu0 %v1417
  %1818 = vmatprep.subr.mxu0 0.0
  %1819 = vmatpush1.msra.mxu0 %v1418
  %1820 = vmatprep.subr.mxu0 0.0
  %1821 = vmatpush1.msra.mxu0 %v1419
  %1822 = vmatprep.subr.mxu0 0.0
  %1823 = vmatpush1.msra.mxu0 %v1420
  %1824 = vmatprep.subr.mxu0 0.0
  %1825 = vmatpush1.msra.mxu0 %v1421
  %1826 = vmatprep.subr.mxu0 0.0
  %1827 = vmatpush1.msra.mxu0 %v1422
  %1828 = vmatprep.subr.mxu0 0.0
  %1829 = vmatpush1.msra.mxu0 %v1423
  %1830 = vmatprep.subr.mxu0 0.0
  %1831 = vmatpush1.msra.mxu0 %v1424
  %1832 = vmatprep.subr.mxu0 0.0
  %1833 = vmatpush1.msra.mxu0 %v1425
  %1834 = vmatprep.subr.mxu0 0.0
  %1835 = vmatpush1.msra.mxu0 %v1426
  %1836 = vmatprep.subr.mxu0 0.0
  %1837 = vmatpush1.msra.mxu0 %v1427
  %1838 = vmatprep.subr.mxu0 0.0
  %1839 = vmatpush1.msra.mxu0 %v1428
  %1840 = vmatprep.subr.mxu0 0.0
  %1841 = vmatpush1.msra.mxu0 %v1429
  %1842 = vmatprep.subr.mxu0 0.0
  %1843 = vmatpush1.msra.mxu0 %v1430
  %1844 = vmatprep.subr.mxu0 0.0
  %1845 = vmatpush1.msra.mxu0 %v1431
  %1846 = vmatprep.subr.mxu0 0.0
  %1847 = vmatpush1.msra.mxu0 %v1432
  %1848 = vmatprep.subr.mxu0 0.0
  %1849 = vmatpush1.msra.mxu0 %v1433
  %1850 = vmatprep.subr.mxu0 0.0
  %1851 = vmatpush1.msra.mxu0 %v1434
  %1852 = vmatprep.subr.mxu0 0.0
  %1853 = vmatpush1.msra.mxu0 %v1435
  %1854 = vmatprep.subr.mxu0 0.0
  %1855 = vmatpush1.msra.mxu0 %v1436
  %1856 = vmatprep.subr.mxu0 0.0
  %1857 = vmatpush1.msra.mxu0 %v1437
  %1858 = vmatprep.subr.mxu0 0.0
  %1859 = vmatpush1.msra.mxu0 %v1438
  %1860 = vmatprep.subr.mxu0 0.0
  %1861 = vmatpush1.msra.mxu0 %v1439
  %1862 = vmatprep.subr.mxu0 0.0
  %1863 = vmatpush1.msra.mxu0 %v1440
  %1864 = vmatprep.subr.mxu0 0.0
  %1865 = vmatpush1.msra.mxu0 %v1441
  %1866 = vmatprep.subr.mxu0 0.0
  %1867 = vmatpush1.msra.mxu0 %v1442
  %1868 = vmatprep.subr.mxu0 0.0
  %1869 = vmatpush1.msra.mxu0 %v1443
  %1870 = vmatprep.subr.mxu0 0.0
  %1871 = vmatpush1.msra.mxu0 %v1444
  %1872 = vmatprep.subr.mxu0 0.0
  %1873 = vmatpush1.msra.mxu0 %v1445
  %1874 = vmatprep.subr.mxu0 0.0
  %1875 = vmatpush1.msra.mxu0 %v1446
  %1876 = vmatprep.subr.mxu0 0.0
  %1877 = vmatpush1.msra.mxu0 %v1447
  %1878 = vmatprep.subr.mxu0 0.0
  %1879 = vmatpush1.msra.mxu0 %v1448
  %1880 = vmatprep.mubr.f32.mxu0 %v1286
  %1881 = vmatmul.mubr.f32.gmra.mrb[0].mxu0 %v1246
  %v1882 = vpop.f32.mrb[0].mxu0
  %v1883 = vadd.f32 %v1813, %v1882
  %v1884 = vpop.f32.mrb[0].mxu0
  %1885 = vdwg.mxu0
  %1886 = vmatprep.subr.mxu0 0.0
  %1887 = vmatpush1.msra.mxu0 %v1449
  %1888 = vmatprep.subr.mxu0 0.0
  %1889 = vmatpush1.msra.mxu0 %v1450
  %1890 = vmatprep.subr.mxu0 0.0
  %1891 = vmatpush1.msra.mxu0 %v1451
  %1892 = vmatprep.subr.mxu0 0.0
  %1893 = vmatpush1.msra.mxu0 %v1452
  %1894 = vmatprep.subr.mxu0 0.0
  %1895 = vmatpush1.msra.mxu0 %v1453
  %1896 = vmatprep.subr.mxu0 0.0
  %1897 = vmatpush1.msra.mxu0 %v1454
  %1898 = vmatprep.subr.mxu0 0.0
  %1899 = vmatpush1.msra.mxu0 %v1455
  %1900 = vmatprep.subr.mxu0 0.0
  %1901 = vmatpush1.msra.mxu0 %v1456
  %1902 = vmatprep.subr.mxu0 0.0
  %1903 = vmatpush1.msra.mxu0 %v1457
  %1904 = vmatprep.subr.mxu0 0.0
  %1905 = vmatpush1.msra.mxu0 %v1458
  %1906 = vmatprep.subr.mxu0 0.0
  %1907 = vmatpush1.msra.mxu0 %v1459
  %1908 = vmatprep.subr.mxu0 0.0
  %1909 = vmatpush1.msra.mxu0 %v1460
  %1910 = vmatprep.subr.mxu0 0.0
  %1911 = vmatpush1.msra.mxu0 %v1461
  %1912 = vmatprep.subr.mxu0 0.0
  %1913 = vmatpush1.msra.mxu0 %v1462
  %1914 = vmatprep.subr.mxu0 0.0
  %1915 = vmatpush1.msra.mxu0 %v1463
  %1916 = vmatprep.subr.mxu0 0.0
  %1917 = vmatpush1.msra.mxu0 %v1464
  %1918 = vmatprep.subr.mxu0 0.0
  %1919 = vmatpush1.msra.mxu0 %v1465
  %1920 = vmatprep.subr.mxu0 0.0
  %1921 = vmatpush1.msra.mxu0 %v1466
  %1922 = vmatprep.subr.mxu0 0.0
  %1923 = vmatpush1.msra.mxu0 %v1467
  %1924 = vmatprep.subr.mxu0 0.0
  %1925 = vmatpush1.msra.mxu0 %v1468
  %1926 = vmatprep.subr.mxu0 0.0
  %1927 = vmatpush1.msra.mxu0 %v1469
  %1928 = vmatprep.subr.mxu0 0.0
  %1929 = vmatpush1.msra.mxu0 %v1470
  %1930 = vmatprep.subr.mxu0 0.0
  %1931 = vmatpush1.msra.mxu0 %v1471
  %1932 = vmatprep.subr.mxu0 0.0
  %1933 = vmatpush1.msra.mxu0 %v1472
  %1934 = vmatprep.subr.mxu0 0.0
  %1935 = vmatpush1.msra.mxu0 %v1473
  %1936 = vmatprep.subr.mxu0 0.0
  %1937 = vmatpush1.msra.mxu0 %v1474
  %1938 = vmatprep.subr.mxu0 0.0
  %1939 = vmatpush1.msra.mxu0 %v1475
  %1940 = vmatprep.subr.mxu0 0.0
  %1941 = vmatpush1.msra.mxu0 %v1476
  %1942 = vmatprep.subr.mxu0 0.0
  %1943 = vmatpush1.msra.mxu0 %v1477
  %1944 = vmatprep.subr.mxu0 0.0
  %1945 = vmatpush1.msra.mxu0 %v1478
  %1946 = vmatprep.subr.mxu0 0.0
  %1947 = vmatpush1.msra.mxu0 %v1479
  %1948 = vmatprep.subr.mxu0 0.0
  %1949 = vmatpush1.msra.mxu0 %v1480
  %1950 = vmatprep.mubr.f32.mxu0 %v1287
  %1951 = vmatmul.mubr.f32.gmra.mrb[0].mxu0 %v1257
  %v1952 = vpop.f32.mrb[0].mxu0
  %v1953 = vadd.f32 %v1883, %v1952
  %v1954 = vpop.f32.mrb[0].mxu0
  %1955 = vdwg.mxu0
  %1956 = vmatprep.subr.mxu0 0.0
  %1957 = vmatpush1.msra.mxu0 %v1481
  %1958 = vmatprep.subr.mxu0 0.0
  %1959 = vmatpush1.msra.mxu0 %v1482
  %1960 = vmatprep.subr.mxu0 0.0
  %1961 = vmatpush1.msra.mxu0 %v1483
  %1962 = vmatprep.subr.mxu0 0.0
  %1963 = vmatpush1.msra.mxu0 %v1484
  %1964 = vmatprep.subr.mxu0 0.0
  %1965 = vmatpush1.msra.mxu0 %v1485
  %1966 = vmatprep.subr.mxu0 0.0
  %1967 = vmatpush1.msra.mxu0 %v1486
  %1968 = vmatprep.subr.mxu0 0.0
  %1969 = vmatpush1.msra.mxu0 %v1487
  %1970 = vmatprep.subr.mxu0 0.0
  %1971 = vmatpush1.msra.mxu0 %v1488
  %1972 = vmatprep.subr.mxu0 0.0
  %1973 = vmatpush1.msra.mxu0 %v1489
  %1974 = vmatprep.subr.mxu0 0.0
  %1975 = vmatpush1.msra.mxu0 %v1490
  %1976 = vmatprep.subr.mxu0 0.0
  %1977 = vmatpush1.msra.mxu0 %v1491
  %1978 = vmatprep.subr.mxu0 0.0
  %1979 = vmatpush1.msra.mxu0 %v1492
  %1980 = vmatprep.subr.mxu0 0.0
  %1981 = vmatpush1.msra.mxu0 %v1493
  %1982 = vmatprep.subr.mxu0 0.0
  %1983 = vmatpush1.msra.mxu0 %v1494
  %1984 = vmatprep.subr.mxu0 0.0
  %1985 = vmatpush1.msra.mxu0 %v1495
  %1986 = vmatprep.subr.mxu0 0.0
  %1987 = vmatpush1.msra.mxu0 %v1496
  %1988 = vmatprep.subr.mxu0 0.0
  %1989 = vmatpush1.msra.mxu0 %v1497
  %1990 = vmatprep.subr.mxu0 0.0
  %1991 = vmatpush1.msra.mxu0 %v1498
  %1992 = vmatprep.subr.mxu0 0.0
  %1993 = vmatpush1.msra.mxu0 %v1499
  %1994 = vmatprep.subr.mxu0 0.0
  %1995 = vmatpush1.msra.mxu0 %v1500
  %1996 = vmatprep.subr.mxu0 0.0
  %1997 = vmatpush1.msra.mxu0 %v1501
  %1998 = vmatprep.subr.mxu0 0.0
  %1999 = vmatpush1.msra.mxu0 %v1502
  %2000 = vmatprep.subr.mxu0 0.0
  %2001 = vmatpush1.msra.mxu0 %v1503
  %2002 = vmatprep.subr.mxu0 0.0
  %2003 = vmatpush1.msra.mxu0 %v1504
  %2004 = vmatprep.subr.mxu0 0.0
  %2005 = vmatpush1.msra.mxu0 %v1505
  %2006 = vmatprep.subr.mxu0 0.0
  %2007 = vmatpush1.msra.mxu0 %v1506
  %2008 = vmatprep.subr.mxu0 0.0
  %2009 = vmatpush1.msra.mxu0 %v1507
  %2010 = vmatprep.subr.mxu0 0.0
  %2011 = vmatpush1.msra.mxu0 %v1508
  %2012 = vmatprep.subr.mxu0 0.0
  %2013 = vmatpush1.msra.mxu0 %v1509
  %2014 = vmatprep.subr.mxu0 0.0
  %2015 = vmatpush1.msra.mxu0 %v1510
  %2016 = vmatprep.subr.mxu0 0.0
  %2017 = vmatpush1.msra.mxu0 %v1511
  %2018 = vmatprep.subr.mxu0 0.0
  %2019 = vmatpush1.msra.mxu0 %v1512
  %2020 = vmatprep.mubr.f32.mxu0 %v1288
  %2021 = vmatmul.mubr.f32.gmra.mrb[0].mxu0 %v1268
  %v2022 = vpop.f32.mrb[0].mxu0
  %v2023 = vadd.f32 %v1953, %v2022
  %v2024 = vpop.f32.mrb[0].mxu0
  %2025 = vdwg.mxu0
  %2026 = vmatprep.subr.mxu0 0.0
  %2027 = vmatpush1.msra.mxu0 %v1513
  %2028 = vmatprep.subr.mxu0 0.0
  %2029 = vmatpush1.msra.mxu0 %v1514
  %2030 = vmatprep.subr.mxu0 0.0
  %2031 = vmatpush1.msra.mxu0 %v1515
  %2032 = vmatprep.subr.mxu0 0.0
  %2033 = vmatpush1.msra.mxu0 %v1516
  %2034 = vmatprep.subr.mxu0 0.0
  %2035 = vmatpush1.msra.mxu0 %v1517
  %2036 = vmatprep.subr.mxu0 0.0
  %2037 = vmatpush1.msra.mxu0 %v1518
  %2038 = vmatprep.subr.mxu0 0.0
  %2039 = vmatpush1.msra.mxu0 %v1519
  %2040 = vmatprep.subr.mxu0 0.0
  %2041 = vmatpush1.msra.mxu0 %v1520
  %2042 = vmatprep.subr.mxu0 0.0
  %2043 = vmatpush1.msra.mxu0 %v1521
  %2044 = vmatprep.subr.mxu0 0.0
  %2045 = vmatpush1.msra.mxu0 %v1522
  %2046 = vmatprep.subr.mxu0 0.0
  %2047 = vmatpush1.msra.mxu0 %v1523
  %2048 = vmatprep.subr.mxu0 0.0
  %2049 = vmatpush1.msra.mxu0 %v1524
  %2050 = vmatprep.subr.mxu0 0.0
  %2051 = vmatpush1.msra.mxu0 %v1525
  %2052 = vmatprep.subr.mxu0 0.0
  %2053 = vmatpush1.msra.mxu0 %v1526
  %2054 = vmatprep.subr.mxu0 0.0
  %2055 = vmatpush1.msra.mxu0 %v1527
  %2056 = vmatprep.subr.mxu0 0.0
  %2057 = vmatpush1.msra.mxu0 %v1528
  %2058 = vmatprep.subr.mxu0 0.0
  %2059 = vmatpush1.msra.mxu0 %v1529
  %2060 = vmatprep.subr.mxu0 0.0
  %2061 = vmatpush1.msra.mxu0 %v1530
  %2062 = vmatprep.subr.mxu0 0.0
  %2063 = vmatpush1.msra.mxu0 %v1531
  %2064 = vmatprep.subr.mxu0 0.0
  %2065 = vmatpush1.msra.mxu0 0.0
  %2066 = vmatprep.subr.mxu0 0.0
  %2067 = vmatpush1.msra.mxu0 0.0
  %2068 = vmatprep.subr.mxu0 0.0
  %2069 = vmatpush1.msra.mxu0 0.0
  %2070 = vmatprep.subr.mxu0 0.0
  %2071 = vmatpush1.msra.mxu0 0.0
  %2072 = vmatprep.subr.mxu0 0.0
  %2073 = vmatpush1.msra.mxu0 0.0
  %2074 = vmatprep.subr.mxu0 0.0
  %2075 = vmatpush1.msra.mxu0 0.0
  %2076 = vmatprep.subr.mxu0 0.0
  %2077 = vmatpush1.msra.mxu0 0.0
  %2078 = vmatprep.subr.mxu0 0.0
  %2079 = vmatpush1.msra.mxu0 0.0
  %2080 = vmatprep.subr.mxu0 0.0
  %2081 = vmatpush1.msra.mxu0 0.0
  %2082 = vmatprep.subr.mxu0 0.0
  %2083 = vmatpush1.msra.mxu0 0.0
  %2084 = vmatprep.subr.mxu0 0.0
  %2085 = vmatpush1.msra.mxu0 0.0
  %2086 = vmatprep.subr.mxu0 0.0
  %2087 = vmatpush1.msra.mxu0 0.0
  %2088 = vmatprep.subr.mxu0 0.0
  %2089 = vmatpush1.msra.mxu0 0.0
  %2090 = vmatprep.mubr.f32.mxu0 %v1534
  %2091 = vmatmul.mubr.f32.gmra.mrb[0].mxu0 %v1279
  %v2092 = vpop.f32.mrb[0].mxu0
  %v2093 = vadd.f32 %v2023, %v2092
  %v2094 = vpop.f32.mrb[0].mxu0
  %2095 = vdwg.mxu0
  %vm2096 = vcmask 237568
  %2097 = vst.msk [vmem:[%s10] sm:$0x1] %vm2096, %v2093
  // Predicated region
  $region42: #{parsing_net_forward.1} parent=0 // pred_check
    _
  $region43: #{parsing_net_forward.1} parent=0 // pred_check_branch
    %2099 = sbr.rel (0) target = $region45
  $region44: #{parsing_net_forward.1} parent=0 // pred_region
    _
  $region45: #{parsing_net_forward.1} parent=0 // pred_fallthru
    _
  // Predicated region
  $region46: #{parsing_net_forward.1} parent=0 // pred_check
    _
  $region47: #{parsing_net_forward.1} parent=0 // pred_check_branch
    %2101 = sbr.rel (0) target = $region49
  $region48: #{parsing_net_forward.1} parent=0 // pred_region
    _
  $region49: #{parsing_net_forward.1} parent=0 // pred_fallthru
    _

</llo_original>
